<compile_context>
chip_gen: v7x
topology: tpu7x:2x2x1
jax: 0.10.0
libtpu: 0.0.40
codegen_flags: <defaults>
</compile_context>

<pallas_src>
import functools
import math

import jax
import jax.numpy as jnp
from jax.experimental import pallas as pl
from jax.experimental.pallas import tpu as pltpu


# ----------------------------------------------------------------------------
# Fused bidirectional-LSTM layer kernel
# ----------------------------------------------------------------------------
def _bilstm_kernel(x_ref, wih_ref, bias_ref, whh_ref, o_ref, *, T, B, G):
    """x_ref: (T*B, In) time-major rows (row = t*B + b).
    wih_ref: (In, 8G) = [W_ih_fwd^T | W_ih_bwd^T]
    bias_ref: (1, 8G) = [b_ih_f + b_hh_f | b_ih_b + b_hh_b]
    whh_ref: (2G, 8G) block-diagonal [[W_hh_f^T, 0], [0, W_hh_b^T]]
    o_ref: (T*B, 2G) = concat(h_fwd_t, h_bwd_t) per (t, b) row.
    """
    # One 128-lane-wide fused input projection for both directions / all gates.
    xp = jnp.dot(x_ref[...], wih_ref[...],
                 preferred_element_type=jnp.float32) + bias_ref[...]   # (T*B, 8G)

    whh = whh_ref[...]
    whh_f = whh[0:G, :]          # (G, 8G) -> fills cols [0, 4G)
    whh_b = whh[G:2 * G, :]      # (G, 8G) -> fills cols [4G, 8G)

    h_f = jnp.zeros((B, G), jnp.float32)
    c_f = jnp.zeros((B, G), jnp.float32)
    h_b = jnp.zeros((B, G), jnp.float32)
    c_b = jnp.zeros((B, G), jnp.float32)

    def cell(gates, c):
        # PyTorch gate order: i, f, g, o
        i = jax.nn.sigmoid(gates[:, 0 * G:1 * G])
        f = jax.nn.sigmoid(gates[:, 1 * G:2 * G])
        g = jnp.tanh(gates[:, 2 * G:3 * G])
        o = jax.nn.sigmoid(gates[:, 3 * G:4 * G])
        c_new = f * c + i * g
        return o * jnp.tanh(c_new), c_new

    # Full recurrence inside one kernel invocation, statically unrolled (T is
    # small) so every slice index is static; fwd and bwd step together.
    for s in range(T):
        tf = s
        tb = T - 1 - s
        rec = (jnp.dot(h_f, whh_f, preferred_element_type=jnp.float32)
               + jnp.dot(h_b, whh_b, preferred_element_type=jnp.float32))  # (B, 8G)
        h_f, c_f = cell(xp[tf * B:(tf + 1) * B, 0:4 * G] + rec[:, 0:4 * G], c_f)
        h_b, c_b = cell(xp[tb * B:(tb + 1) * B, 4 * G:8 * G] + rec[:, 4 * G:8 * G], c_b)
        o_ref[tf * B:(tf + 1) * B, 0:G] = h_f
        o_ref[tb * B:(tb + 1) * B, G:2 * G] = h_b


def bilstm_layer(x2d, p_fwd, p_bwd, T, B):
    """x2d: (T*B, In) -> (T*B, 2G). Matches nn.LSTM(bidirectional) layer."""
    TB, In = x2d.shape
    w_ih_f, w_hh_f, b_ih_f, b_hh_f = p_fwd
    w_ih_b, w_hh_b, b_ih_b, b_hh_b = p_bwd
    G = w_hh_f.shape[1]

    wih = jnp.concatenate([w_ih_f.T, w_ih_b.T], axis=1)                 # (In, 8G)
    bias = jnp.concatenate([b_ih_f + b_hh_f, b_ih_b + b_hh_b]).reshape(1, 8 * G)
    whh = jnp.zeros((2 * G, 8 * G), jnp.float32)
    whh = whh.at[:G, :4 * G].set(w_hh_f.T)
    whh = whh.at[G:, 4 * G:].set(w_hh_b.T)

    kern = functools.partial(_bilstm_kernel, T=T, B=B, G=G)
    return pl.pallas_call(
        kern,
        out_shape=jax.ShapeDtypeStruct((TB, 2 * G), jnp.float32),
        grid=(1,),
        in_specs=[
            pl.BlockSpec((TB, In), lambda i: (0, 0)),
            pl.BlockSpec((In, 8 * G), lambda i: (0, 0)),
            pl.BlockSpec((1, 8 * G), lambda i: (0, 0)),
            pl.BlockSpec((2 * G, 8 * G), lambda i: (0, 0)),
        ],
        out_specs=pl.BlockSpec((TB, 2 * G), lambda i: (0, 0)),
        compiler_params=pltpu.CompilerParams(dimension_semantics=("arbitrary",)),
    )(x2d, wih, bias, whh)


# ----------------------------------------------------------------------------
# Fused Transformer encoder layer kernel (post-norm, ReLU FFN, eval mode)
# ----------------------------------------------------------------------------
def _encoder_layer_kernel(x_ref, wqkv_ref, bqkv_ref, wo_ref, bo_ref,
                          w1_ref, b1_ref, w2_ref, b2_ref, ln_ref, o_ref,
                          *, num_heads, L, final_norm):
    """x_ref: (M, E) with row = n*L + l (n = transformer batch, l = attended pos).
    Attention is block-diagonal over groups of L consecutive rows.
    ln_ref rows: [ln1_g, ln1_b, ln2_g, ln2_b, final_g, final_b].
    """
    x = x_ref[...]                                   # (M, E)
    M, E = x.shape
    d = E // num_heads
    scale = 1.0 / math.sqrt(d)

    qkv = jnp.dot(x, wqkv_ref[...],
                  preferred_element_type=jnp.float32) + bqkv_ref[...]   # (M, 3E)
    wo = wo_ref[...]                                                    # (E, E)

    # Block-diagonal mask: rows i, j attend iff they share the same group n = row // L.
    ri = jax.lax.broadcasted_iota(jnp.int32, (M, M), 0) // L
    ci = jax.lax.broadcasted_iota(jnp.int32, (M, M), 1) // L
    neg = jnp.where(ri == ci, 0.0, -1e9).astype(jnp.float32)

    # All heads in one invocation; out-projection accumulated per head
    # (equivalent to concat(heads) @ W_o^T).
    attn = jnp.zeros((M, E), jnp.float32)
    for hh in range(num_heads):
        qh = qkv[:, hh * d:(hh + 1) * d]
        kh = qkv[:, E + hh * d:E + (hh + 1) * d]
        vh = qkv[:, 2 * E + hh * d:2 * E + (hh + 1) * d]
        s = jnp.dot(qh, kh.T, preferred_element_type=jnp.float32) * scale + neg
        s = s - jnp.max(s, axis=-1, keepdims=True)
        p = jnp.exp(s)
        p = p * pl.reciprocal(jnp.sum(p, axis=-1, keepdims=True), approx=True)
        ctx = jnp.dot(p, vh, preferred_element_type=jnp.float32)        # (M, d)
        attn = attn + jnp.dot(ctx, wo[hh * d:(hh + 1) * d, :],
                              preferred_element_type=jnp.float32)
    attn = attn + bo_ref[...]

    lnp = ln_ref[...]

    def ln(z, g, b):
        mu = jnp.mean(z, axis=-1, keepdims=True)
        var = jnp.mean(jnp.square(z - mu), axis=-1, keepdims=True)
        return (z - mu) * jax.lax.rsqrt(var + 1e-5) * g + b   # PyTorch LayerNorm eps

    y = ln(x + attn, lnp[0:1, :], lnp[1:2, :])
    ff = jnp.maximum(
        jnp.dot(y, w1_ref[...], preferred_element_type=jnp.float32) + b1_ref[...], 0.0)
    ff = jnp.dot(ff, w2_ref[...], preferred_element_type=jnp.float32) + b2_ref[...]
    y = ln(y + ff, lnp[2:3, :], lnp[3:4, :])
    if final_norm:                                   # fused TransformerEncoder.norm
        y = ln(y, lnp[4:5, :], lnp[5:6, :])
    o_ref[...] = y


def encoder_layer(x2d, p, num_heads, L, final_norm, lnf_g, lnf_b):
    M, E = x2d.shape
    wqkv = p["in_proj_w"].T
    bqkv = p["in_proj_b"].reshape(1, 3 * E)
    wo = p["out_proj_w"].T
    bo = p["out_proj_b"].reshape(1, E)
    w1 = p["lin1_w"].T
    b1 = p["lin1_b"].reshape(1, E)
    w2 = p["lin2_w"].T
    b2 = p["lin2_b"].reshape(1, E)
    lnp = jnp.stack([p["ln1_g"], p["ln1_b"], p["ln2_g"], p["ln2_b"], lnf_g, lnf_b], axis=0)

    kern = functools.partial(_encoder_layer_kernel, num_heads=num_heads, L=L,
                             final_norm=final_norm)
    return pl.pallas_call(
        kern,
        out_shape=jax.ShapeDtypeStruct((M, E), jnp.float32),
        grid=(1,),
        in_specs=[
            pl.BlockSpec((M, E), lambda i: (0, 0)),
            pl.BlockSpec((E, 3 * E), lambda i: (0, 0)),
            pl.BlockSpec((1, 3 * E), lambda i: (0, 0)),
            pl.BlockSpec((E, E), lambda i: (0, 0)),
            pl.BlockSpec((1, E), lambda i: (0, 0)),
            pl.BlockSpec((E, E), lambda i: (0, 0)),
            pl.BlockSpec((1, E), lambda i: (0, 0)),
            pl.BlockSpec((E, E), lambda i: (0, 0)),
            pl.BlockSpec((1, E), lambda i: (0, 0)),
            pl.BlockSpec((6, E), lambda i: (0, 0)),
        ],
        out_specs=pl.BlockSpec((M, E), lambda i: (0, 0)),
        compiler_params=pltpu.CompilerParams(dimension_semantics=("arbitrary",)),
    )(x2d, wqkv, bqkv, wo, bo, w1, b1, w2, b2, lnp)


# ----------------------------------------------------------------------------
# Model forward (layout plumbing only outside the kernels)
# ----------------------------------------------------------------------------
def trfm_seq2seq_forward(params, src):
    """Forward of TrfmSeq2seq with recons=False: returns (loss=0, hidden)."""
    B, T, In = src.shape
    # Time-major flatten once: row = t*B + b.  This same row order serves as
    # (n=T transformer-batch, l=B attended-position) for the encoder.
    x = src.transpose(1, 0, 2).reshape(T * B, In)

    for layer in params["lstm"]:
        x = bilstm_layer(x, layer["fwd"], layer["bwd"], T, B)           # (T*B, 2G)

    h = x                                                               # (T*B, H)
    n_enc = len(params["enc_layers"])
    for li, lp in enumerate(params["enc_layers"]):
        h = encoder_layer(h, lp, params["num_heads"], B,
                          final_norm=(li == n_enc - 1),
                          lnf_g=params["enc_norm_g"], lnf_b=params["enc_norm_b"])

    H = h.shape[-1]
    hidden = h.reshape(T, B, H).transpose(1, 0, 2)                      # (B, T, H)

    loss = jnp.float32(0.0)
    # TODO(synk): recons=True branch (transformer decoder + out Linear +
    # log_softmax + nll_loss) not implemented; reference default is recons=False.
    return loss, hidden


# ----------------------------------------------------------------------------
# Deterministic synthetic parameters (shapes follow the module's __init__)
# ----------------------------------------------------------------------------
def init_params(key, input_dim, hidden_size, num_head, n_layers):
    G = hidden_size // 2
    H = hidden_size
    keys = iter(jax.random.split(key, 512))

    def nrm(shape, scale=0.08):
        return scale * jax.random.normal(next(keys), shape, jnp.float32)

    lstm = []
    in_sz = input_dim
    for _ in range(3):                            # num_layers=3, bidirectional
        layer = {}
        for d in ("fwd", "bwd"):
            layer[d] = (
                nrm((4 * G, in_sz)),              # weight_ih
                nrm((4 * G, G)),                  # weight_hh
                nrm((4 * G,)),                    # bias_ih
                nrm((4 * G,)),                    # bias_hh
            )
        lstm.append(layer)
        in_sz = 2 * G

    enc_layers = []
    for _ in range(n_layers):
        enc_layers.append(dict(
            in_proj_w=nrm((3 * H, H)), in_proj_b=nrm((3 * H,)),
            out_proj_w=nrm((H, H)), out_proj_b=nrm((H,)),
            lin1_w=nrm((H, H)), lin1_b=nrm((H,)),      # dim_feedforward = H
            lin2_w=nrm((H, H)), lin2_b=nrm((H,)),
            ln1_g=jnp.ones((H,), jnp.float32), ln1_b=jnp.zeros((H,), jnp.float32),
            ln2_g=jnp.ones((H,), jnp.float32), ln2_b=jnp.zeros((H,), jnp.float32),
        ))

    return dict(
        lstm=lstm,
        enc_layers=enc_layers,
        enc_norm_g=jnp.ones((H,), jnp.float32),
        enc_norm_b=jnp.zeros((H,), jnp.float32),
        num_heads=num_head,
        out_w=nrm((input_dim, H)), out_b=nrm((input_dim,)),   # self.out (recons path)
    )


if __name__ == "__main__":
    input_dim, hidden_size, num_head, n_layers = 16, 32, 4, 2
    B, T = 2, 8

    key = jax.random.PRNGKey(0)
    pkey, xkey = jax.random.split(key)
    params = init_params(pkey, input_dim, hidden_size, num_head, n_layers)
    src = jax.random.normal(xkey, (B, T, input_dim), jnp.float32)

    loss, hidden = trfm_seq2seq_forward(params, src)
    hidden = jax.block_until_ready(hidden)
    loss = jax.block_until_ready(loss)

    assert hidden.shape == (B, T, hidden_size), hidden.shape
    assert bool(jnp.all(jnp.isfinite(hidden)))
    print("KERNEL_OK")
</pallas_src>

<mosaic_0001>
module attributes {stable_mosaic.version = 11 : i64} {
  func.func @_bilstm_kernel(%arg0: i32, %arg1: memref<16x16xf32, #tpu.memory_space<vmem>>, %arg2: memref<16x128xf32, #tpu.memory_space<vmem>>, %arg3: memref<1x128xf32, #tpu.memory_space<vmem>>, %arg4: memref<32x128xf32, #tpu.memory_space<vmem>>, %arg5: memref<16x32xf32, #tpu.memory_space<vmem>>) attributes {dimension_semantics = [#tpu.dimension_semantics<arbitrary>], iteration_bounds = array<i64: 1>, scalar_prefetch = 0 : i64, scratch_operands = 0 : i64, tpu.core_type = #tpu.core_type<tc>, window_params = [{pipeline_mode = #tpu.pipeline_mode<synchronous>, transform_indices = @transform_0, window_bounds = array<i64: 16, 16>}, {pipeline_mode = #tpu.pipeline_mode<synchronous>, transform_indices = @transform_1, window_bounds = array<i64: 16, 128>}, {pipeline_mode = #tpu.pipeline_mode<synchronous>, transform_indices = @transform_2, window_bounds = array<i64: 1, 128>}, {pipeline_mode = #tpu.pipeline_mode<synchronous>, transform_indices = @transform_3, window_bounds = array<i64: 32, 128>}, {pipeline_mode = #tpu.pipeline_mode<synchronous>, transform_indices = @transform_4, window_bounds = array<i64: 16, 32>}]} {
    %c0 = arith.constant 0 : index
    %c0_0 = arith.constant 0 : index
    %0 = vector.load %arg1[%c0, %c0_0] : memref<16x16xf32, #tpu.memory_space<vmem>>, vector<16x16xf32>
    %c0_1 = arith.constant 0 : index
    %c0_2 = arith.constant 0 : index
    %1 = vector.load %arg2[%c0_1, %c0_2] : memref<16x128xf32, #tpu.memory_space<vmem>>, vector<16x128xf32>
    %cst = arith.constant dense<0.000000e+00> : vector<16x128xf32>
    %2 = tpu.matmul %0, %1, %cst {dimension_numbers = #tpu.dot_dimension_numbers<[1], [0], [0], [1], [0, 0, 1, 1], [], []>} : vector<16x16xf32>, vector<16x128xf32>, vector<16x128xf32> -> vector<16x128xf32>
    %c0_3 = arith.constant 0 : index
    %c0_4 = arith.constant 0 : index
    %3 = vector.load %arg3[%c0_3, %c0_4] : memref<1x128xf32, #tpu.memory_space<vmem>>, vector<1x128xf32>
    %4 = vector.broadcast %3 : vector<1x128xf32> to vector<16x128xf32>
    %5 = arith.addf %2, %4 : vector<16x128xf32>
    %c0_5 = arith.constant 0 : index
    %c0_6 = arith.constant 0 : index
    %6 = vector.load %arg4[%c0_5, %c0_6] : memref<32x128xf32, #tpu.memory_space<vmem>>, vector<32x128xf32>
    %7 = vector.extract_strided_slice %6 {offsets = [0, 0], sizes = [16, 128], strides = [1, 1]} : vector<32x128xf32> to vector<16x128xf32>
    %8 = vector.extract_strided_slice %6 {offsets = [16, 0], sizes = [16, 128], strides = [1, 1]} : vector<32x128xf32> to vector<16x128xf32>
    %cst_7 = arith.constant 0.000000e+00 : f32
    %9 = vector.broadcast %cst_7 : f32 to vector<2x16xf32>
    %cst_8 = arith.constant 0.000000e+00 : f32
    %10 = vector.broadcast %cst_8 : f32 to vector<2x16xf32>
    %cst_9 = arith.constant 0.000000e+00 : f32
    %11 = vector.broadcast %cst_9 : f32 to vector<2x16xf32>
    %cst_10 = arith.constant 0.000000e+00 : f32
    %12 = vector.broadcast %cst_10 : f32 to vector<2x16xf32>
    %cst_11 = arith.constant dense<0.000000e+00> : vector<2x128xf32>
    %13 = tpu.matmul %9, %7, %cst_11 {dimension_numbers = #tpu.dot_dimension_numbers<[1], [0], [0], [1], [0, 0, 1, 1], [], []>} : vector<2x16xf32>, vector<16x128xf32>, vector<2x128xf32> -> vector<2x128xf32>
    %cst_12 = arith.constant dense<0.000000e+00> : vector<2x128xf32>
    %14 = tpu.matmul %11, %8, %cst_12 {dimension_numbers = #tpu.dot_dimension_numbers<[1], [0], [0], [1], [0, 0, 1, 1], [], []>} : vector<2x16xf32>, vector<16x128xf32>, vector<2x128xf32> -> vector<2x128xf32>
    %15 = arith.addf %13, %14 : vector<2x128xf32>
    %16 = vector.extract_strided_slice %5 {offsets = [0, 0], sizes = [2, 64], strides = [1, 1]} : vector<16x128xf32> to vector<2x64xf32>
    %17 = vector.extract_strided_slice %15 {offsets = [0, 0], sizes = [2, 64], strides = [1, 1]} : vector<2x128xf32> to vector<2x64xf32>
    %18 = arith.addf %16, %17 : vector<2x64xf32>
    %19 = vector.extract_strided_slice %18 {offsets = [0, 0], sizes = [2, 16], strides = [1, 1]} : vector<2x64xf32> to vector<2x16xf32>
    %20 = arith.negf %19 : vector<2x16xf32>
    %21 = math.exp %20 : vector<2x16xf32>
    %cst_13 = arith.constant 1.000000e+00 : f32
    %22 = vector.broadcast %cst_13 : f32 to vector<2x16xf32>
    %23 = arith.addf %22, %21 : vector<2x16xf32>
    %24 = arith.divf %22, %23 : vector<2x16xf32>
    %25 = vector.extract_strided_slice %18 {offsets = [0, 16], sizes = [2, 16], strides = [1, 1]} : vector<2x64xf32> to vector<2x16xf32>
    %26 = arith.negf %25 : vector<2x16xf32>
    %27 = math.exp %26 : vector<2x16xf32>
    %cst_14 = arith.constant 1.000000e+00 : f32
    %28 = vector.broadcast %cst_14 : f32 to vector<2x16xf32>
    %29 = arith.addf %28, %27 : vector<2x16xf32>
    %30 = arith.divf %28, %29 : vector<2x16xf32>
    %31 = vector.extract_strided_slice %18 {offsets = [0, 32], sizes = [2, 16], strides = [1, 1]} : vector<2x64xf32> to vector<2x16xf32>
    %32 = math.tanh %31 : vector<2x16xf32>
    %33 = vector.extract_strided_slice %18 {offsets = [0, 48], sizes = [2, 16], strides = [1, 1]} : vector<2x64xf32> to vector<2x16xf32>
    %34 = arith.negf %33 : vector<2x16xf32>
    %35 = math.exp %34 : vector<2x16xf32>
    %cst_15 = arith.constant 1.000000e+00 : f32
    %36 = vector.broadcast %cst_15 : f32 to vector<2x16xf32>
    %37 = arith.addf %36, %35 : vector<2x16xf32>
    %38 = arith.divf %36, %37 : vector<2x16xf32>
    %39 = arith.mulf %30, %10 : vector<2x16xf32>
    %40 = arith.mulf %24, %32 : vector<2x16xf32>
    %41 = arith.addf %39, %40 : vector<2x16xf32>
    %42 = math.tanh %41 : vector<2x16xf32>
    %43 = arith.mulf %38, %42 : vector<2x16xf32>
    %44 = vector.extract_strided_slice %5 {offsets = [14, 64], sizes = [2, 64], strides = [1, 1]} : vector<16x128xf32> to vector<2x64xf32>
    %45 = vector.extract_strided_slice %15 {offsets = [0, 64], sizes = [2, 64], strides = [1, 1]} : vector<2x128xf32> to vector<2x64xf32>
    %46 = arith.addf %44, %45 : vector<2x64xf32>
    %47 = vector.extract_strided_slice %46 {offsets = [0, 0], sizes = [2, 16], strides = [1, 1]} : vector<2x64xf32> to vector<2x16xf32>
    %48 = arith.negf %47 : vector<2x16xf32>
    %49 = math.exp %48 : vector<2x16xf32>
    %cst_16 = arith.constant 1.000000e+00 : f32
    %50 = vector.broadcast %cst_16 : f32 to vector<2x16xf32>
    %51 = arith.addf %50, %49 : vector<2x16xf32>
    %52 = arith.divf %50, %51 : vector<2x16xf32>
    %53 = vector.extract_strided_slice %46 {offsets = [0, 16], sizes = [2, 16], strides = [1, 1]} : vector<2x64xf32> to vector<2x16xf32>
    %54 = arith.negf %53 : vector<2x16xf32>
    %55 = math.exp %54 : vector<2x16xf32>
    %cst_17 = arith.constant 1.000000e+00 : f32
    %56 = vector.broadcast %cst_17 : f32 to vector<2x16xf32>
    %57 = arith.addf %56, %55 : vector<2x16xf32>
    %58 = arith.divf %56, %57 : vector<2x16xf32>
    %59 = vector.extract_strided_slice %46 {offsets = [0, 32], sizes = [2, 16], strides = [1, 1]} : vector<2x64xf32> to vector<2x16xf32>
    %60 = math.tanh %59 : vector<2x16xf32>
    %61 = vector.extract_strided_slice %46 {offsets = [0, 48], sizes = [2, 16], strides = [1, 1]} : vector<2x64xf32> to vector<2x16xf32>
    %62 = arith.negf %61 : vector<2x16xf32>
    %63 = math.exp %62 : vector<2x16xf32>
    %cst_18 = arith.constant 1.000000e+00 : f32
    %64 = vector.broadcast %cst_18 : f32 to vector<2x16xf32>
    %65 = arith.addf %64, %63 : vector<2x16xf32>
    %66 = arith.divf %64, %65 : vector<2x16xf32>
    %67 = arith.mulf %58, %12 : vector<2x16xf32>
    %68 = arith.mulf %52, %60 : vector<2x16xf32>
    %69 = arith.addf %67, %68 : vector<2x16xf32>
    %70 = math.tanh %69 : vector<2x16xf32>
    %71 = arith.mulf %66, %70 : vector<2x16xf32>
    %c0_19 = arith.constant 0 : index
    %c0_20 = arith.constant 0 : index
    %72 = vector.load %arg5[%c0_19, %c0_20] : memref<16x32xf32, #tpu.memory_space<vmem>>, vector<2x16xf32>
    tpu.vector_store %arg5[%c0_19, %c0_20], %43 {strides = array<i32>} : memref<16x32xf32, #tpu.memory_space<vmem>>, vector<2x16xf32>,
    %c14 = arith.constant 14 : index
    %c16 = arith.constant 16 : index
    %73 = vector.load %arg5[%c14, %c16] : memref<16x32xf32, #tpu.memory_space<vmem>>, vector<2x16xf32>
    tpu.vector_store %arg5[%c14, %c16], %71 {strides = array<i32>} : memref<16x32xf32, #tpu.memory_space<vmem>>, vector<2x16xf32>,
    %cst_21 = arith.constant dense<0.000000e+00> : vector<2x128xf32>
    %74 = tpu.matmul %43, %7, %cst_21 {dimension_numbers = #tpu.dot_dimension_numbers<[1], [0], [0], [1], [0, 0, 1, 1], [], []>} : vector<2x16xf32>, vector<16x128xf32>, vector<2x128xf32> -> vector<2x128xf32>
    %cst_22 = arith.constant dense<0.000000e+00> : vector<2x128xf32>
    %75 = tpu.matmul %71, %8, %cst_22 {dimension_numbers = #tpu.dot_dimension_numbers<[1], [0], [0], [1], [0, 0, 1, 1], [], []>} : vector<2x16xf32>, vector<16x128xf32>, vector<2x128xf32> -> vector<2x128xf32>
    %76 = arith.addf %74, %75 : vector<2x128xf32>
    %77 = vector.extract_strided_slice %5 {offsets = [2, 0], sizes = [2, 64], strides = [1, 1]} : vector<16x128xf32> to vector<2x64xf32>
    %78 = vector.extract_strided_slice %76 {offsets = [0, 0], sizes = [2, 64], strides = [1, 1]} : vector<2x128xf32> to vector<2x64xf32>
    %79 = arith.addf %77, %78 : vector<2x64xf32>
    %80 = vector.extract_strided_slice %79 {offsets = [0, 0], sizes = [2, 16], strides = [1, 1]} : vector<2x64xf32> to vector<2x16xf32>
    %81 = arith.negf %80 : vector<2x16xf32>
    %82 = math.exp %81 : vector<2x16xf32>
    %cst_23 = arith.constant 1.000000e+00 : f32
    %83 = vector.broadcast %cst_23 : f32 to vector<2x16xf32>
    %84 = arith.addf %83, %82 : vector<2x16xf32>
    %85 = arith.divf %83, %84 : vector<2x16xf32>
    %86 = vector.extract_strided_slice %79 {offsets = [0, 16], sizes = [2, 16], strides = [1, 1]} : vector<2x64xf32> to vector<2x16xf32>
    %87 = arith.negf %86 : vector<2x16xf32>
    %88 = math.exp %87 : vector<2x16xf32>
    %cst_24 = arith.constant 1.000000e+00 : f32
    %89 = vector.broadcast %cst_24 : f32 to vector<2x16xf32>
    %90 = arith.addf %89, %88 : vector<2x16xf32>
    %91 = arith.divf %89, %90 : vector<2x16xf32>
    %92 = vector.extract_strided_slice %79 {offsets = [0, 32], sizes = [2, 16], strides = [1, 1]} : vector<2x64xf32> to vector<2x16xf32>
    %93 = math.tanh %92 : vector<2x16xf32>
    %94 = vector.extract_strided_slice %79 {offsets = [0, 48], sizes = [2, 16], strides = [1, 1]} : vector<2x64xf32> to vector<2x16xf32>
    %95 = arith.negf %94 : vector<2x16xf32>
    %96 = math.exp %95 : vector<2x16xf32>
    %cst_25 = arith.constant 1.000000e+00 : f32
    %97 = vector.broadcast %cst_25 : f32 to vector<2x16xf32>
    %98 = arith.addf %97, %96 : vector<2x16xf32>
    %99 = arith.divf %97, %98 : vector<2x16xf32>
    %100 = arith.mulf %91, %41 : vector<2x16xf32>
    %101 = arith.mulf %85, %93 : vector<2x16xf32>
    %102 = arith.addf %100, %101 : vector<2x16xf32>
    %103 = math.tanh %102 : vector<2x16xf32>
    %104 = arith.mulf %99, %103 : vector<2x16xf32>
    %105 = vector.extract_strided_slice %5 {offsets = [12, 64], sizes = [2, 64], strides = [1, 1]} : vector<16x128xf32> to vector<2x64xf32>
    %106 = vector.extract_strided_slice %76 {offsets = [0, 64], sizes = [2, 64], strides = [1, 1]} : vector<2x128xf32> to vector<2x64xf32>
    %107 = arith.addf %105, %106 : vector<2x64xf32>
    %108 = vector.extract_strided_slice %107 {offsets = [0, 0], sizes = [2, 16], strides = [1, 1]} : vector<2x64xf32> to vector<2x16xf32>
    %109 = arith.negf %108 : vector<2x16xf32>
    %110 = math.exp %109 : vector<2x16xf32>
    %cst_26 = arith.constant 1.000000e+00 : f32
    %111 = vector.broadcast %cst_26 : f32 to vector<2x16xf32>
    %112 = arith.addf %111, %110 : vector<2x16xf32>
    %113 = arith.divf %111, %112 : vector<2x16xf32>
    %114 = vector.extract_strided_slice %107 {offsets = [0, 16], sizes = [2, 16], strides = [1, 1]} : vector<2x64xf32> to vector<2x16xf32>
    %115 = arith.negf %114 : vector<2x16xf32>
    %116 = math.exp %115 : vector<2x16xf32>
    %cst_27 = arith.constant 1.000000e+00 : f32
    %117 = vector.broadcast %cst_27 : f32 to vector<2x16xf32>
    %118 = arith.addf %117, %116 : vector<2x16xf32>
    %119 = arith.divf %117, %118 : vector<2x16xf32>
    %120 = vector.extract_strided_slice %107 {offsets = [0, 32], sizes = [2, 16], strides = [1, 1]} : vector<2x64xf32> to vector<2x16xf32>
    %121 = math.tanh %120 : vector<2x16xf32>
    %122 = vector.extract_strided_slice %107 {offsets = [0, 48], sizes = [2, 16], strides = [1, 1]} : vector<2x64xf32> to vector<2x16xf32>
    %123 = arith.negf %122 : vector<2x16xf32>
    %124 = math.exp %123 : vector<2x16xf32>
    %cst_28 = arith.constant 1.000000e+00 : f32
    %125 = vector.broadcast %cst_28 : f32 to vector<2x16xf32>
    %126 = arith.addf %125, %124 : vector<2x16xf32>
    %127 = arith.divf %125, %126 : vector<2x16xf32>
    %128 = arith.mulf %119, %69 : vector<2x16xf32>
    %129 = arith.mulf %113, %121 : vector<2x16xf32>
    %130 = arith.addf %128, %129 : vector<2x16xf32>
    %131 = math.tanh %130 : vector<2x16xf32>
    %132 = arith.mulf %127, %131 : vector<2x16xf32>
    %c2 = arith.constant 2 : index
    %c0_29 = arith.constant 0 : index
    %133 = vector.load %arg5[%c2, %c0_29] : memref<16x32xf32, #tpu.memory_space<vmem>>, vector<2x16xf32>
    tpu.vector_store %arg5[%c2, %c0_29], %104 {strides = array<i32>} : memref<16x32xf32, #tpu.memory_space<vmem>>, vector<2x16xf32>,
    %c12 = arith.constant 12 : index
    %c16_30 = arith.constant 16 : index
    %134 = vector.load %arg5[%c12, %c16_30] : memref<16x32xf32, #tpu.memory_space<vmem>>, vector<2x16xf32>
    tpu.vector_store %arg5[%c12, %c16_30], %132 {strides = array<i32>} : memref<16x32xf32, #tpu.memory_space<vmem>>, vector<2x16xf32>,
    %cst_31 = arith.constant dense<0.000000e+00> : vector<2x128xf32>
    %135 = tpu.matmul %104, %7, %cst_31 {dimension_numbers = #tpu.dot_dimension_numbers<[1], [0], [0], [1], [0, 0, 1, 1], [], []>} : vector<2x16xf32>, vector<16x128xf32>, vector<2x128xf32> -> vector<2x128xf32>
    %cst_32 = arith.constant dense<0.000000e+00> : vector<2x128xf32>
    %136 = tpu.matmul %132, %8, %cst_32 {dimension_numbers = #tpu.dot_dimension_numbers<[1], [0], [0], [1], [0, 0, 1, 1], [], []>} : vector<2x16xf32>, vector<16x128xf32>, vector<2x128xf32> -> vector<2x128xf32>
    %137 = arith.addf %135, %136 : vector<2x128xf32>
    %138 = vector.extract_strided_slice %5 {offsets = [4, 0], sizes = [2, 64], strides = [1, 1]} : vector<16x128xf32> to vector<2x64xf32>
    %139 = vector.extract_strided_slice %137 {offsets = [0, 0], sizes = [2, 64], strides = [1, 1]} : vector<2x128xf32> to vector<2x64xf32>
    %140 = arith.addf %138, %139 : vector<2x64xf32>
    %141 = vector.extract_strided_slice %140 {offsets = [0, 0], sizes = [2, 16], strides = [1, 1]} : vector<2x64xf32> to vector<2x16xf32>
    %142 = arith.negf %141 : vector<2x16xf32>
    %143 = math.exp %142 : vector<2x16xf32>
    %cst_33 = arith.constant 1.000000e+00 : f32
    %144 = vector.broadcast %cst_33 : f32 to vector<2x16xf32>
    %145 = arith.addf %144, %143 : vector<2x16xf32>
    %146 = arith.divf %144, %145 : vector<2x16xf32>
    %147 = vector.extract_strided_slice %140 {offsets = [0, 16], sizes = [2, 16], strides = [1, 1]} : vector<2x64xf32> to vector<2x16xf32>
    %148 = arith.negf %147 : vector<2x16xf32>
    %149 = math.exp %148 : vector<2x16xf32>
    %cst_34 = arith.constant 1.000000e+00 : f32
    %150 = vector.broadcast %cst_34 : f32 to vector<2x16xf32>
    %151 = arith.addf %150, %149 : vector<2x16xf32>
    %152 = arith.divf %150, %151 : vector<2x16xf32>
    %153 = vector.extract_strided_slice %140 {offsets = [0, 32], sizes = [2, 16], strides = [1, 1]} : vector<2x64xf32> to vector<2x16xf32>
    %154 = math.tanh %153 : vector<2x16xf32>
    %155 = vector.extract_strided_slice %140 {offsets = [0, 48], sizes = [2, 16], strides = [1, 1]} : vector<2x64xf32> to vector<2x16xf32>
    %156 = arith.negf %155 : vector<2x16xf32>
    %157 = math.exp %156 : vector<2x16xf32>
    %cst_35 = arith.constant 1.000000e+00 : f32
    %158 = vector.broadcast %cst_35 : f32 to vector<2x16xf32>
    %159 = arith.addf %158, %157 : vector<2x16xf32>
    %160 = arith.divf %158, %159 : vector<2x16xf32>
    %161 = arith.mulf %152, %102 : vector<2x16xf32>
    %162 = arith.mulf %146, %154 : vector<2x16xf32>
    %163 = arith.addf %161, %162 : vector<2x16xf32>
    %164 = math.tanh %163 : vector<2x16xf32>
    %165 = arith.mulf %160, %164 : vector<2x16xf32>
    %166 = vector.extract_strided_slice %5 {offsets = [10, 64], sizes = [2, 64], strides = [1, 1]} : vector<16x128xf32> to vector<2x64xf32>
    %167 = vector.extract_strided_slice %137 {offsets = [0, 64], sizes = [2, 64], strides = [1, 1]} : vector<2x128xf32> to vector<2x64xf32>
    %168 = arith.addf %166, %167 : vector<2x64xf32>
    %169 = vector.extract_strided_slice %168 {offsets = [0, 0], sizes = [2, 16], strides = [1, 1]} : vector<2x64xf32> to vector<2x16xf32>
    %170 = arith.negf %169 : vector<2x16xf32>
    %171 = math.exp %170 : vector<2x16xf32>
    %cst_36 = arith.constant 1.000000e+00 : f32
    %172 = vector.broadcast %cst_36 : f32 to vector<2x16xf32>
    %173 = arith.addf %172, %171 : vector<2x16xf32>
    %174 = arith.divf %172, %173 : vector<2x16xf32>
    %175 = vector.extract_strided_slice %168 {offsets = [0, 16], sizes = [2, 16], strides = [1, 1]} : vector<2x64xf32> to vector<2x16xf32>
    %176 = arith.negf %175 : vector<2x16xf32>
    %177 = math.exp %176 : vector<2x16xf32>
    %cst_37 = arith.constant 1.000000e+00 : f32
    %178 = vector.broadcast %cst_37 : f32 to vector<2x16xf32>
    %179 = arith.addf %178, %177 : vector<2x16xf32>
    %180 = arith.divf %178, %179 : vector<2x16xf32>
    %181 = vector.extract_strided_slice %168 {offsets = [0, 32], sizes = [2, 16], strides = [1, 1]} : vector<2x64xf32> to vector<2x16xf32>
    %182 = math.tanh %181 : vector<2x16xf32>
    %183 = vector.extract_strided_slice %168 {offsets = [0, 48], sizes = [2, 16], strides = [1, 1]} : vector<2x64xf32> to vector<2x16xf32>
    %184 = arith.negf %183 : vector<2x16xf32>
    %185 = math.exp %184 : vector<2x16xf32>
    %cst_38 = arith.constant 1.000000e+00 : f32
    %186 = vector.broadcast %cst_38 : f32 to vector<2x16xf32>
    %187 = arith.addf %186, %185 : vector<2x16xf32>
    %188 = arith.divf %186, %187 : vector<2x16xf32>
    %189 = arith.mulf %180, %130 : vector<2x16xf32>
    %190 = arith.mulf %174, %182 : vector<2x16xf32>
    %191 = arith.addf %189, %190 : vector<2x16xf32>
    %192 = math.tanh %191 : vector<2x16xf32>
    %193 = arith.mulf %188, %192 : vector<2x16xf32>
    %c4 = arith.constant 4 : index
    %c0_39 = arith.constant 0 : index
    %194 = vector.load %arg5[%c4, %c0_39] : memref<16x32xf32, #tpu.memory_space<vmem>>, vector<2x16xf32>
    tpu.vector_store %arg5[%c4, %c0_39], %165 {strides = array<i32>} : memref<16x32xf32, #tpu.memory_space<vmem>>, vector<2x16xf32>,
    %c10 = arith.constant 10 : index
    %c16_40 = arith.constant 16 : index
    %195 = vector.load %arg5[%c10, %c16_40] : memref<16x32xf32, #tpu.memory_space<vmem>>, vector<2x16xf32>
    tpu.vector_store %arg5[%c10, %c16_40], %193 {strides = array<i32>} : memref<16x32xf32, #tpu.memory_space<vmem>>, vector<2x16xf32>,
    %cst_41 = arith.constant dense<0.000000e+00> : vector<2x128xf32>
    %196 = tpu.matmul %165, %7, %cst_41 {dimension_numbers = #tpu.dot_dimension_numbers<[1], [0], [0], [1], [0, 0, 1, 1], [], []>} : vector<2x16xf32>, vector<16x128xf32>, vector<2x128xf32> -> vector<2x128xf32>
    %cst_42 = arith.constant dense<0.000000e+00> : vector<2x128xf32>
    %197 = tpu.matmul %193, %8, %cst_42 {dimension_numbers = #tpu.dot_dimension_numbers<[1], [0], [0], [1], [0, 0, 1, 1], [], []>} : vector<2x16xf32>, vector<16x128xf32>, vector<2x128xf32> -> vector<2x128xf32>
    %198 = arith.addf %196, %197 : vector<2x128xf32>
    %199 = vector.extract_strided_slice %5 {offsets = [6, 0], sizes = [2, 64], strides = [1, 1]} : vector<16x128xf32> to vector<2x64xf32>
    %200 = vector.extract_strided_slice %198 {offsets = [0, 0], sizes = [2, 64], strides = [1, 1]} : vector<2x128xf32> to vector<2x64xf32>
    %201 = arith.addf %199, %200 : vector<2x64xf32>
    %202 = vector.extract_strided_slice %201 {offsets = [0, 0], sizes = [2, 16], strides = [1, 1]} : vector<2x64xf32> to vector<2x16xf32>
    %203 = arith.negf %202 : vector<2x16xf32>
    %204 = math.exp %203 : vector<2x16xf32>
    %cst_43 = arith.constant 1.000000e+00 : f32
    %205 = vector.broadcast %cst_43 : f32 to vector<2x16xf32>
    %206 = arith.addf %205, %204 : vector<2x16xf32>
    %207 = arith.divf %205, %206 : vector<2x16xf32>
    %208 = vector.extract_strided_slice %201 {offsets = [0, 16], sizes = [2, 16], strides = [1, 1]} : vector<2x64xf32> to vector<2x16xf32>
    %209 = arith.negf %208 : vector<2x16xf32>
    %210 = math.exp %209 : vector<2x16xf32>
    %cst_44 = arith.constant 1.000000e+00 : f32
    %211 = vector.broadcast %cst_44 : f32 to vector<2x16xf32>
    %212 = arith.addf %211, %210 : vector<2x16xf32>
    %213 = arith.divf %211, %212 : vector<2x16xf32>
    %214 = vector.extract_strided_slice %201 {offsets = [0, 32], sizes = [2, 16], strides = [1, 1]} : vector<2x64xf32> to vector<2x16xf32>
    %215 = math.tanh %214 : vector<2x16xf32>
    %216 = vector.extract_strided_slice %201 {offsets = [0, 48], sizes = [2, 16], strides = [1, 1]} : vector<2x64xf32> to vector<2x16xf32>
    %217 = arith.negf %216 : vector<2x16xf32>
    %218 = math.exp %217 : vector<2x16xf32>
    %cst_45 = arith.constant 1.000000e+00 : f32
    %219 = vector.broadcast %cst_45 : f32 to vector<2x16xf32>
    %220 = arith.addf %219, %218 : vector<2x16xf32>
    %221 = arith.divf %219, %220 : vector<2x16xf32>
    %222 = arith.mulf %213, %163 : vector<2x16xf32>
    %223 = arith.mulf %207, %215 : vector<2x16xf32>
    %224 = arith.addf %222, %223 : vector<2x16xf32>
    %225 = math.tanh %224 : vector<2x16xf32>
    %226 = arith.mulf %221, %225 : vector<2x16xf32>
    %227 = vector.extract_strided_slice %5 {offsets = [8, 64], sizes = [2, 64], strides = [1, 1]} : vector<16x128xf32> to vector<2x64xf32>
    %228 = vector.extract_strided_slice %198 {offsets = [0, 64], sizes = [2, 64], strides = [1, 1]} : vector<2x128xf32> to vector<2x64xf32>
    %229 = arith.addf %227, %228 : vector<2x64xf32>
    %230 = vector.extract_strided_slice %229 {offsets = [0, 0], sizes = [2, 16], strides = [1, 1]} : vector<2x64xf32> to vector<2x16xf32>
    %231 = arith.negf %230 : vector<2x16xf32>
    %232 = math.exp %231 : vector<2x16xf32>
    %cst_46 = arith.constant 1.000000e+00 : f32
    %233 = vector.broadcast %cst_46 : f32 to vector<2x16xf32>
    %234 = arith.addf %233, %232 : vector<2x16xf32>
    %235 = arith.divf %233, %234 : vector<2x16xf32>
    %236 = vector.extract_strided_slice %229 {offsets = [0, 16], sizes = [2, 16], strides = [1, 1]} : vector<2x64xf32> to vector<2x16xf32>
    %237 = arith.negf %236 : vector<2x16xf32>
    %238 = math.exp %237 : vector<2x16xf32>
    %cst_47 = arith.constant 1.000000e+00 : f32
    %239 = vector.broadcast %cst_47 : f32 to vector<2x16xf32>
    %240 = arith.addf %239, %238 : vector<2x16xf32>
    %241 = arith.divf %239, %240 : vector<2x16xf32>
    %242 = vector.extract_strided_slice %229 {offsets = [0, 32], sizes = [2, 16], strides = [1, 1]} : vector<2x64xf32> to vector<2x16xf32>
    %243 = math.tanh %242 : vector<2x16xf32>
    %244 = vector.extract_strided_slice %229 {offsets = [0, 48], sizes = [2, 16], strides = [1, 1]} : vector<2x64xf32> to vector<2x16xf32>
    %245 = arith.negf %244 : vector<2x16xf32>
    %246 = math.exp %245 : vector<2x16xf32>
    %cst_48 = arith.constant 1.000000e+00 : f32
    %247 = vector.broadcast %cst_48 : f32 to vector<2x16xf32>
    %248 = arith.addf %247, %246 : vector<2x16xf32>
    %249 = arith.divf %247, %248 : vector<2x16xf32>
    %250 = arith.mulf %241, %191 : vector<2x16xf32>
    %251 = arith.mulf %235, %243 : vector<2x16xf32>
    %252 = arith.addf %250, %251 : vector<2x16xf32>
    %253 = math.tanh %252 : vector<2x16xf32>
    %254 = arith.mulf %249, %253 : vector<2x16xf32>
    %c6 = arith.constant 6 : index
    %c0_49 = arith.constant 0 : index
    %255 = vector.load %arg5[%c6, %c0_49] : memref<16x32xf32, #tpu.memory_space<vmem>>, vector<2x16xf32>
    tpu.vector_store %arg5[%c6, %c0_49], %226 {strides = array<i32>} : memref<16x32xf32, #tpu.memory_space<vmem>>, vector<2x16xf32>,
    %c8 = arith.constant 8 : index
    %c16_50 = arith.constant 16 : index
    %256 = vector.load %arg5[%c8, %c16_50] : memref<16x32xf32, #tpu.memory_space<vmem>>, vector<2x16xf32>
    tpu.vector_store %arg5[%c8, %c16_50], %254 {strides = array<i32>} : memref<16x32xf32, #tpu.memory_space<vmem>>, vector<2x16xf32>,
    %cst_51 = arith.constant dense<0.000000e+00> : vector<2x128xf32>
    %257 = tpu.matmul %226, %7, %cst_51 {dimension_numbers = #tpu.dot_dimension_numbers<[1], [0], [0], [1], [0, 0, 1, 1], [], []>} : vector<2x16xf32>, vector<16x128xf32>, vector<2x128xf32> -> vector<2x128xf32>
    %cst_52 = arith.constant dense<0.000000e+00> : vector<2x128xf32>
    %258 = tpu.matmul %254, %8, %cst_52 {dimension_numbers = #tpu.dot_dimension_numbers<[1], [0], [0], [1], [0, 0, 1, 1], [], []>} : vector<2x16xf32>, vector<16x128xf32>, vector<2x128xf32> -> vector<2x128xf32>
    %259 = arith.addf %257, %258 : vector<2x128xf32>
    %260 = vector.extract_strided_slice %5 {offsets = [8, 0], sizes = [2, 64], strides = [1, 1]} : vector<16x128xf32> to vector<2x64xf32>
    %261 = vector.extract_strided_slice %259 {offsets = [0, 0], sizes = [2, 64], strides = [1, 1]} : vector<2x128xf32> to vector<2x64xf32>
    %262 = arith.addf %260, %261 : vector<2x64xf32>
    %263 = vector.extract_strided_slice %262 {offsets = [0, 0], sizes = [2, 16], strides = [1, 1]} : vector<2x64xf32> to vector<2x16xf32>
    %264 = arith.negf %263 : vector<2x16xf32>
    %265 = math.exp %264 : vector<2x16xf32>
    %cst_53 = arith.constant 1.000000e+00 : f32
    %266 = vector.broadcast %cst_53 : f32 to vector<2x16xf32>
    %267 = arith.addf %266, %265 : vector<2x16xf32>
    %268 = arith.divf %266, %267 : vector<2x16xf32>
    %269 = vector.extract_strided_slice %262 {offsets = [0, 16], sizes = [2, 16], strides = [1, 1]} : vector<2x64xf32> to vector<2x16xf32>
    %270 = arith.negf %269 : vector<2x16xf32>
    %271 = math.exp %270 : vector<2x16xf32>
    %cst_54 = arith.constant 1.000000e+00 : f32
    %272 = vector.broadcast %cst_54 : f32 to vector<2x16xf32>
    %273 = arith.addf %272, %271 : vector<2x16xf32>
    %274 = arith.divf %272, %273 : vector<2x16xf32>
    %275 = vector.extract_strided_slice %262 {offsets = [0, 32], sizes = [2, 16], strides = [1, 1]} : vector<2x64xf32> to vector<2x16xf32>
    %276 = math.tanh %275 : vector<2x16xf32>
    %277 = vector.extract_strided_slice %262 {offsets = [0, 48], sizes = [2, 16], strides = [1, 1]} : vector<2x64xf32> to vector<2x16xf32>
    %278 = arith.negf %277 : vector<2x16xf32>
    %279 = math.exp %278 : vector<2x16xf32>
    %cst_55 = arith.constant 1.000000e+00 : f32
    %280 = vector.broadcast %cst_55 : f32 to vector<2x16xf32>
    %281 = arith.addf %280, %279 : vector<2x16xf32>
    %282 = arith.divf %280, %281 : vector<2x16xf32>
    %283 = arith.mulf %274, %224 : vector<2x16xf32>
    %284 = arith.mulf %268, %276 : vector<2x16xf32>
    %285 = arith.addf %283, %284 : vector<2x16xf32>
    %286 = math.tanh %285 : vector<2x16xf32>
    %287 = arith.mulf %282, %286 : vector<2x16xf32>
    %288 = vector.extract_strided_slice %5 {offsets = [6, 64], sizes = [2, 64], strides = [1, 1]} : vector<16x128xf32> to vector<2x64xf32>
    %289 = vector.extract_strided_slice %259 {offsets = [0, 64], sizes = [2, 64], strides = [1, 1]} : vector<2x128xf32> to vector<2x64xf32>
    %290 = arith.addf %288, %289 : vector<2x64xf32>
    %291 = vector.extract_strided_slice %290 {offsets = [0, 0], sizes = [2, 16], strides = [1, 1]} : vector<2x64xf32> to vector<2x16xf32>
    %292 = arith.negf %291 : vector<2x16xf32>
    %293 = math.exp %292 : vector<2x16xf32>
    %cst_56 = arith.constant 1.000000e+00 : f32
    %294 = vector.broadcast %cst_56 : f32 to vector<2x16xf32>
    %295 = arith.addf %294, %293 : vector<2x16xf32>
    %296 = arith.divf %294, %295 : vector<2x16xf32>
    %297 = vector.extract_strided_slice %290 {offsets = [0, 16], sizes = [2, 16], strides = [1, 1]} : vector<2x64xf32> to vector<2x16xf32>
    %298 = arith.negf %297 : vector<2x16xf32>
    %299 = math.exp %298 : vector<2x16xf32>
    %cst_57 = arith.constant 1.000000e+00 : f32
    %300 = vector.broadcast %cst_57 : f32 to vector<2x16xf32>
    %301 = arith.addf %300, %299 : vector<2x16xf32>
    %302 = arith.divf %300, %301 : vector<2x16xf32>
    %303 = vector.extract_strided_slice %290 {offsets = [0, 32], sizes = [2, 16], strides = [1, 1]} : vector<2x64xf32> to vector<2x16xf32>
    %304 = math.tanh %303 : vector<2x16xf32>
    %305 = vector.extract_strided_slice %290 {offsets = [0, 48], sizes = [2, 16], strides = [1, 1]} : vector<2x64xf32> to vector<2x16xf32>
    %306 = arith.negf %305 : vector<2x16xf32>
    %307 = math.exp %306 : vector<2x16xf32>
    %cst_58 = arith.constant 1.000000e+00 : f32
    %308 = vector.broadcast %cst_58 : f32 to vector<2x16xf32>
    %309 = arith.addf %308, %307 : vector<2x16xf32>
    %310 = arith.divf %308, %309 : vector<2x16xf32>
    %311 = arith.mulf %302, %252 : vector<2x16xf32>
    %312 = arith.mulf %296, %304 : vector<2x16xf32>
    %313 = arith.addf %311, %312 : vector<2x16xf32>
    %314 = math.tanh %313 : vector<2x16xf32>
    %315 = arith.mulf %310, %314 : vector<2x16xf32>
    %c8_59 = arith.constant 8 : index
    %c0_60 = arith.constant 0 : index
    %316 = vector.load %arg5[%c8_59, %c0_60] : memref<16x32xf32, #tpu.memory_space<vmem>>, vector<2x16xf32>
    tpu.vector_store %arg5[%c8_59, %c0_60], %287 {strides = array<i32>} : memref<16x32xf32, #tpu.memory_space<vmem>>, vector<2x16xf32>,
    %c6_61 = arith.constant 6 : index
    %c16_62 = arith.constant 16 : index
    %317 = vector.load %arg5[%c6_61, %c16_62] : memref<16x32xf32, #tpu.memory_space<vmem>>, vector<2x16xf32>
    tpu.vector_store %arg5[%c6_61, %c16_62], %315 {strides = array<i32>} : memref<16x32xf32, #tpu.memory_space<vmem>>, vector<2x16xf32>,
    %cst_63 = arith.constant dense<0.000000e+00> : vector<2x128xf32>
    %318 = tpu.matmul %287, %7, %cst_63 {dimension_numbers = #tpu.dot_dimension_numbers<[1], [0], [0], [1], [0, 0, 1, 1], [], []>} : vector<2x16xf32>, vector<16x128xf32>, vector<2x128xf32> -> vector<2x128xf32>
    %cst_64 = arith.constant dense<0.000000e+00> : vector<2x128xf32>
    %319 = tpu.matmul %315, %8, %cst_64 {dimension_numbers = #tpu.dot_dimension_numbers<[1], [0], [0], [1], [0, 0, 1, 1], [], []>} : vector<2x16xf32>, vector<16x128xf32>, vector<2x128xf32> -> vector<2x128xf32>
    %320 = arith.addf %318, %319 : vector<2x128xf32>
    %321 = vector.extract_strided_slice %5 {offsets = [10, 0], sizes = [2, 64], strides = [1, 1]} : vector<16x128xf32> to vector<2x64xf32>
    %322 = vector.extract_strided_slice %320 {offsets = [0, 0], sizes = [2, 64], strides = [1, 1]} : vector<2x128xf32> to vector<2x64xf32>
    %323 = arith.addf %321, %322 : vector<2x64xf32>
    %324 = vector.extract_strided_slice %323 {offsets = [0, 0], sizes = [2, 16], strides = [1, 1]} : vector<2x64xf32> to vector<2x16xf32>
    %325 = arith.negf %324 : vector<2x16xf32>
    %326 = math.exp %325 : vector<2x16xf32>
    %cst_65 = arith.constant 1.000000e+00 : f32
    %327 = vector.broadcast %cst_65 : f32 to vector<2x16xf32>
    %328 = arith.addf %327, %326 : vector<2x16xf32>
    %329 = arith.divf %327, %328 : vector<2x16xf32>
    %330 = vector.extract_strided_slice %323 {offsets = [0, 16], sizes = [2, 16], strides = [1, 1]} : vector<2x64xf32> to vector<2x16xf32>
    %331 = arith.negf %330 : vector<2x16xf32>
    %332 = math.exp %331 : vector<2x16xf32>
    %cst_66 = arith.constant 1.000000e+00 : f32
    %333 = vector.broadcast %cst_66 : f32 to vector<2x16xf32>
    %334 = arith.addf %333, %332 : vector<2x16xf32>
    %335 = arith.divf %333, %334 : vector<2x16xf32>
    %336 = vector.extract_strided_slice %323 {offsets = [0, 32], sizes = [2, 16], strides = [1, 1]} : vector<2x64xf32> to vector<2x16xf32>
    %337 = math.tanh %336 : vector<2x16xf32>
    %338 = vector.extract_strided_slice %323 {offsets = [0, 48], sizes = [2, 16], strides = [1, 1]} : vector<2x64xf32> to vector<2x16xf32>
    %339 = arith.negf %338 : vector<2x16xf32>
    %340 = math.exp %339 : vector<2x16xf32>
    %cst_67 = arith.constant 1.000000e+00 : f32
    %341 = vector.broadcast %cst_67 : f32 to vector<2x16xf32>
    %342 = arith.addf %341, %340 : vector<2x16xf32>
    %343 = arith.divf %341, %342 : vector<2x16xf32>
    %344 = arith.mulf %335, %285 : vector<2x16xf32>
    %345 = arith.mulf %329, %337 : vector<2x16xf32>
    %346 = arith.addf %344, %345 : vector<2x16xf32>
    %347 = math.tanh %346 : vector<2x16xf32>
    %348 = arith.mulf %343, %347 : vector<2x16xf32>
    %349 = vector.extract_strided_slice %5 {offsets = [4, 64], sizes = [2, 64], strides = [1, 1]} : vector<16x128xf32> to vector<2x64xf32>
    %350 = vector.extract_strided_slice %320 {offsets = [0, 64], sizes = [2, 64], strides = [1, 1]} : vector<2x128xf32> to vector<2x64xf32>
    %351 = arith.addf %349, %350 : vector<2x64xf32>
    %352 = vector.extract_strided_slice %351 {offsets = [0, 0], sizes = [2, 16], strides = [1, 1]} : vector<2x64xf32> to vector<2x16xf32>
    %353 = arith.negf %352 : vector<2x16xf32>
    %354 = math.exp %353 : vector<2x16xf32>
    %cst_68 = arith.constant 1.000000e+00 : f32
    %355 = vector.broadcast %cst_68 : f32 to vector<2x16xf32>
    %356 = arith.addf %355, %354 : vector<2x16xf32>
    %357 = arith.divf %355, %356 : vector<2x16xf32>
    %358 = vector.extract_strided_slice %351 {offsets = [0, 16], sizes = [2, 16], strides = [1, 1]} : vector<2x64xf32> to vector<2x16xf32>
    %359 = arith.negf %358 : vector<2x16xf32>
    %360 = math.exp %359 : vector<2x16xf32>
    %cst_69 = arith.constant 1.000000e+00 : f32
    %361 = vector.broadcast %cst_69 : f32 to vector<2x16xf32>
    %362 = arith.addf %361, %360 : vector<2x16xf32>
    %363 = arith.divf %361, %362 : vector<2x16xf32>
    %364 = vector.extract_strided_slice %351 {offsets = [0, 32], sizes = [2, 16], strides = [1, 1]} : vector<2x64xf32> to vector<2x16xf32>
    %365 = math.tanh %364 : vector<2x16xf32>
    %366 = vector.extract_strided_slice %351 {offsets = [0, 48], sizes = [2, 16], strides = [1, 1]} : vector<2x64xf32> to vector<2x16xf32>
    %367 = arith.negf %366 : vector<2x16xf32>
    %368 = math.exp %367 : vector<2x16xf32>
    %cst_70 = arith.constant 1.000000e+00 : f32
    %369 = vector.broadcast %cst_70 : f32 to vector<2x16xf32>
    %370 = arith.addf %369, %368 : vector<2x16xf32>
    %371 = arith.divf %369, %370 : vector<2x16xf32>
    %372 = arith.mulf %363, %313 : vector<2x16xf32>
    %373 = arith.mulf %357, %365 : vector<2x16xf32>
    %374 = arith.addf %372, %373 : vector<2x16xf32>
    %375 = math.tanh %374 : vector<2x16xf32>
    %376 = arith.mulf %371, %375 : vector<2x16xf32>
    %c10_71 = arith.constant 10 : index
    %c0_72 = arith.constant 0 : index
    %377 = vector.load %arg5[%c10_71, %c0_72] : memref<16x32xf32, #tpu.memory_space<vmem>>, vector<2x16xf32>
    tpu.vector_store %arg5[%c10_71, %c0_72], %348 {strides = array<i32>} : memref<16x32xf32, #tpu.memory_space<vmem>>, vector<2x16xf32>,
    %c4_73 = arith.constant 4 : index
    %c16_74 = arith.constant 16 : index
    %378 = vector.load %arg5[%c4_73, %c16_74] : memref<16x32xf32, #tpu.memory_space<vmem>>, vector<2x16xf32>
    tpu.vector_store %arg5[%c4_73, %c16_74], %376 {strides = array<i32>} : memref<16x32xf32, #tpu.memory_space<vmem>>, vector<2x16xf32>,
    %cst_75 = arith.constant dense<0.000000e+00> : vector<2x128xf32>
    %379 = tpu.matmul %348, %7, %cst_75 {dimension_numbers = #tpu.dot_dimension_numbers<[1], [0], [0], [1], [0, 0, 1, 1], [], []>} : vector<2x16xf32>, vector<16x128xf32>, vector<2x128xf32> -> vector<2x128xf32>
    %cst_76 = arith.constant dense<0.000000e+00> : vector<2x128xf32>
    %380 = tpu.matmul %376, %8, %cst_76 {dimension_numbers = #tpu.dot_dimension_numbers<[1], [0], [0], [1], [0, 0, 1, 1], [], []>} : vector<2x16xf32>, vector<16x128xf32>, vector<2x128xf32> -> vector<2x128xf32>
    %381 = arith.addf %379, %380 : vector<2x128xf32>
    %382 = vector.extract_strided_slice %5 {offsets = [12, 0], sizes = [2, 64], strides = [1, 1]} : vector<16x128xf32> to vector<2x64xf32>
    %383 = vector.extract_strided_slice %381 {offsets = [0, 0], sizes = [2, 64], strides = [1, 1]} : vector<2x128xf32> to vector<2x64xf32>
    %384 = arith.addf %382, %383 : vector<2x64xf32>
    %385 = vector.extract_strided_slice %384 {offsets = [0, 0], sizes = [2, 16], strides = [1, 1]} : vector<2x64xf32> to vector<2x16xf32>
    %386 = arith.negf %385 : vector<2x16xf32>
    %387 = math.exp %386 : vector<2x16xf32>
    %cst_77 = arith.constant 1.000000e+00 : f32
    %388 = vector.broadcast %cst_77 : f32 to vector<2x16xf32>
    %389 = arith.addf %388, %387 : vector<2x16xf32>
    %390 = arith.divf %388, %389 : vector<2x16xf32>
    %391 = vector.extract_strided_slice %384 {offsets = [0, 16], sizes = [2, 16], strides = [1, 1]} : vector<2x64xf32> to vector<2x16xf32>
    %392 = arith.negf %391 : vector<2x16xf32>
    %393 = math.exp %392 : vector<2x16xf32>
    %cst_78 = arith.constant 1.000000e+00 : f32
    %394 = vector.broadcast %cst_78 : f32 to vector<2x16xf32>
    %395 = arith.addf %394, %393 : vector<2x16xf32>
    %396 = arith.divf %394, %395 : vector<2x16xf32>
    %397 = vector.extract_strided_slice %384 {offsets = [0, 32], sizes = [2, 16], strides = [1, 1]} : vector<2x64xf32> to vector<2x16xf32>
    %398 = math.tanh %397 : vector<2x16xf32>
    %399 = vector.extract_strided_slice %384 {offsets = [0, 48], sizes = [2, 16], strides = [1, 1]} : vector<2x64xf32> to vector<2x16xf32>
    %400 = arith.negf %399 : vector<2x16xf32>
    %401 = math.exp %400 : vector<2x16xf32>
    %cst_79 = arith.constant 1.000000e+00 : f32
    %402 = vector.broadcast %cst_79 : f32 to vector<2x16xf32>
    %403 = arith.addf %402, %401 : vector<2x16xf32>
    %404 = arith.divf %402, %403 : vector<2x16xf32>
    %405 = arith.mulf %396, %346 : vector<2x16xf32>
    %406 = arith.mulf %390, %398 : vector<2x16xf32>
    %407 = arith.addf %405, %406 : vector<2x16xf32>
    %408 = math.tanh %407 : vector<2x16xf32>
    %409 = arith.mulf %404, %408 : vector<2x16xf32>
    %410 = vector.extract_strided_slice %5 {offsets = [2, 64], sizes = [2, 64], strides = [1, 1]} : vector<16x128xf32> to vector<2x64xf32>
    %411 = vector.extract_strided_slice %381 {offsets = [0, 64], sizes = [2, 64], strides = [1, 1]} : vector<2x128xf32> to vector<2x64xf32>
    %412 = arith.addf %410, %411 : vector<2x64xf32>
    %413 = vector.extract_strided_slice %412 {offsets = [0, 0], sizes = [2, 16], strides = [1, 1]} : vector<2x64xf32> to vector<2x16xf32>
    %414 = arith.negf %413 : vector<2x16xf32>
    %415 = math.exp %414 : vector<2x16xf32>
    %cst_80 = arith.constant 1.000000e+00 : f32
    %416 = vector.broadcast %cst_80 : f32 to vector<2x16xf32>
    %417 = arith.addf %416, %415 : vector<2x16xf32>
    %418 = arith.divf %416, %417 : vector<2x16xf32>
    %419 = vector.extract_strided_slice %412 {offsets = [0, 16], sizes = [2, 16], strides = [1, 1]} : vector<2x64xf32> to vector<2x16xf32>
    %420 = arith.negf %419 : vector<2x16xf32>
    %421 = math.exp %420 : vector<2x16xf32>
    %cst_81 = arith.constant 1.000000e+00 : f32
    %422 = vector.broadcast %cst_81 : f32 to vector<2x16xf32>
    %423 = arith.addf %422, %421 : vector<2x16xf32>
    %424 = arith.divf %422, %423 : vector<2x16xf32>
    %425 = vector.extract_strided_slice %412 {offsets = [0, 32], sizes = [2, 16], strides = [1, 1]} : vector<2x64xf32> to vector<2x16xf32>
    %426 = math.tanh %425 : vector<2x16xf32>
    %427 = vector.extract_strided_slice %412 {offsets = [0, 48], sizes = [2, 16], strides = [1, 1]} : vector<2x64xf32> to vector<2x16xf32>
    %428 = arith.negf %427 : vector<2x16xf32>
    %429 = math.exp %428 : vector<2x16xf32>
    %cst_82 = arith.constant 1.000000e+00 : f32
    %430 = vector.broadcast %cst_82 : f32 to vector<2x16xf32>
    %431 = arith.addf %430, %429 : vector<2x16xf32>
    %432 = arith.divf %430, %431 : vector<2x16xf32>
    %433 = arith.mulf %424, %374 : vector<2x16xf32>
    %434 = arith.mulf %418, %426 : vector<2x16xf32>
    %435 = arith.addf %433, %434 : vector<2x16xf32>
    %436 = math.tanh %435 : vector<2x16xf32>
    %437 = arith.mulf %432, %436 : vector<2x16xf32>
    %c12_83 = arith.constant 12 : index
    %c0_84 = arith.constant 0 : index
    %438 = vector.load %arg5[%c12_83, %c0_84] : memref<16x32xf32, #tpu.memory_space<vmem>>, vector<2x16xf32>
    tpu.vector_store %arg5[%c12_83, %c0_84], %409 {strides = array<i32>} : memref<16x32xf32, #tpu.memory_space<vmem>>, vector<2x16xf32>,
    %c2_85 = arith.constant 2 : index
    %c16_86 = arith.constant 16 : index
    %439 = vector.load %arg5[%c2_85, %c16_86] : memref<16x32xf32, #tpu.memory_space<vmem>>, vector<2x16xf32>
    tpu.vector_store %arg5[%c2_85, %c16_86], %437 {strides = array<i32>} : memref<16x32xf32, #tpu.memory_space<vmem>>, vector<2x16xf32>,
    %cst_87 = arith.constant dense<0.000000e+00> : vector<2x128xf32>
    %440 = tpu.matmul %409, %7, %cst_87 {dimension_numbers = #tpu.dot_dimension_numbers<[1], [0], [0], [1], [0, 0, 1, 1], [], []>} : vector<2x16xf32>, vector<16x128xf32>, vector<2x128xf32> -> vector<2x128xf32>
    %cst_88 = arith.constant dense<0.000000e+00> : vector<2x128xf32>
    %441 = tpu.matmul %437, %8, %cst_88 {dimension_numbers = #tpu.dot_dimension_numbers<[1], [0], [0], [1], [0, 0, 1, 1], [], []>} : vector<2x16xf32>, vector<16x128xf32>, vector<2x128xf32> -> vector<2x128xf32>
    %442 = arith.addf %440, %441 : vector<2x128xf32>
    %443 = vector.extract_strided_slice %5 {offsets = [14, 0], sizes = [2, 64], strides = [1, 1]} : vector<16x128xf32> to vector<2x64xf32>
    %444 = vector.extract_strided_slice %442 {offsets = [0, 0], sizes = [2, 64], strides = [1, 1]} : vector<2x128xf32> to vector<2x64xf32>
    %445 = arith.addf %443, %444 : vector<2x64xf32>
    %446 = vector.extract_strided_slice %445 {offsets = [0, 0], sizes = [2, 16], strides = [1, 1]} : vector<2x64xf32> to vector<2x16xf32>
    %447 = arith.negf %446 : vector<2x16xf32>
    %448 = math.exp %447 : vector<2x16xf32>
    %cst_89 = arith.constant 1.000000e+00 : f32
    %449 = vector.broadcast %cst_89 : f32 to vector<2x16xf32>
    %450 = arith.addf %449, %448 : vector<2x16xf32>
    %451 = arith.divf %449, %450 : vector<2x16xf32>
    %452 = vector.extract_strided_slice %445 {offsets = [0, 16], sizes = [2, 16], strides = [1, 1]} : vector<2x64xf32> to vector<2x16xf32>
    %453 = arith.negf %452 : vector<2x16xf32>
    %454 = math.exp %453 : vector<2x16xf32>
    %cst_90 = arith.constant 1.000000e+00 : f32
    %455 = vector.broadcast %cst_90 : f32 to vector<2x16xf32>
    %456 = arith.addf %455, %454 : vector<2x16xf32>
    %457 = arith.divf %455, %456 : vector<2x16xf32>
    %458 = vector.extract_strided_slice %445 {offsets = [0, 32], sizes = [2, 16], strides = [1, 1]} : vector<2x64xf32> to vector<2x16xf32>
    %459 = math.tanh %458 : vector<2x16xf32>
    %460 = vector.extract_strided_slice %445 {offsets = [0, 48], sizes = [2, 16], strides = [1, 1]} : vector<2x64xf32> to vector<2x16xf32>
    %461 = arith.negf %460 : vector<2x16xf32>
    %462 = math.exp %461 : vector<2x16xf32>
    %cst_91 = arith.constant 1.000000e+00 : f32
    %463 = vector.broadcast %cst_91 : f32 to vector<2x16xf32>
    %464 = arith.addf %463, %462 : vector<2x16xf32>
    %465 = arith.divf %463, %464 : vector<2x16xf32>
    %466 = arith.mulf %457, %407 : vector<2x16xf32>
    %467 = arith.mulf %451, %459 : vector<2x16xf32>
    %468 = arith.addf %466, %467 : vector<2x16xf32>
    %469 = math.tanh %468 : vector<2x16xf32>
    %470 = arith.mulf %465, %469 : vector<2x16xf32>
    %471 = vector.extract_strided_slice %5 {offsets = [0, 64], sizes = [2, 64], strides = [1, 1]} : vector<16x128xf32> to vector<2x64xf32>
    %472 = vector.extract_strided_slice %442 {offsets = [0, 64], sizes = [2, 64], strides = [1, 1]} : vector<2x128xf32> to vector<2x64xf32>
    %473 = arith.addf %471, %472 : vector<2x64xf32>
    %474 = vector.extract_strided_slice %473 {offsets = [0, 0], sizes = [2, 16], strides = [1, 1]} : vector<2x64xf32> to vector<2x16xf32>
    %475 = arith.negf %474 : vector<2x16xf32>
    %476 = math.exp %475 : vector<2x16xf32>
    %cst_92 = arith.constant 1.000000e+00 : f32
    %477 = vector.broadcast %cst_92 : f32 to vector<2x16xf32>
    %478 = arith.addf %477, %476 : vector<2x16xf32>
    %479 = arith.divf %477, %478 : vector<2x16xf32>
    %480 = vector.extract_strided_slice %473 {offsets = [0, 16], sizes = [2, 16], strides = [1, 1]} : vector<2x64xf32> to vector<2x16xf32>
    %481 = arith.negf %480 : vector<2x16xf32>
    %482 = math.exp %481 : vector<2x16xf32>
    %cst_93 = arith.constant 1.000000e+00 : f32
    %483 = vector.broadcast %cst_93 : f32 to vector<2x16xf32>
    %484 = arith.addf %483, %482 : vector<2x16xf32>
    %485 = arith.divf %483, %484 : vector<2x16xf32>
    %486 = vector.extract_strided_slice %473 {offsets = [0, 32], sizes = [2, 16], strides = [1, 1]} : vector<2x64xf32> to vector<2x16xf32>
    %487 = math.tanh %486 : vector<2x16xf32>
    %488 = vector.extract_strided_slice %473 {offsets = [0, 48], sizes = [2, 16], strides = [1, 1]} : vector<2x64xf32> to vector<2x16xf32>
    %489 = arith.negf %488 : vector<2x16xf32>
    %490 = math.exp %489 : vector<2x16xf32>
    %cst_94 = arith.constant 1.000000e+00 : f32
    %491 = vector.broadcast %cst_94 : f32 to vector<2x16xf32>
    %492 = arith.addf %491, %490 : vector<2x16xf32>
    %493 = arith.divf %491, %492 : vector<2x16xf32>
    %494 = arith.mulf %485, %435 : vector<2x16xf32>
    %495 = arith.mulf %479, %487 : vector<2x16xf32>
    %496 = arith.addf %494, %495 : vector<2x16xf32>
    %497 = math.tanh %496 : vector<2x16xf32>
    %498 = arith.mulf %493, %497 : vector<2x16xf32>
    %c14_95 = arith.constant 14 : index
    %c0_96 = arith.constant 0 : index
    %499 = vector.load %arg5[%c14_95, %c0_96] : memref<16x32xf32, #tpu.memory_space<vmem>>, vector<2x16xf32>
    tpu.vector_store %arg5[%c14_95, %c0_96], %470 {strides = array<i32>} : memref<16x32xf32, #tpu.memory_space<vmem>>, vector<2x16xf32>,
    %c0_97 = arith.constant 0 : index
    %c16_98 = arith.constant 16 : index
    %500 = vector.load %arg5[%c0_97, %c16_98] : memref<16x32xf32, #tpu.memory_space<vmem>>, vector<2x16xf32>
    tpu.vector_store %arg5[%c0_97, %c16_98], %498 {strides = array<i32>} : memref<16x32xf32, #tpu.memory_space<vmem>>, vector<2x16xf32>,
    return
  }
  func.func @transform_0(%arg0: i32) -> (i32, i32) {
    %c0_i32 = arith.constant 0 : i32
    %c0_i32_0 = arith.constant 0 : i32
    %c0_i32_1 = arith.constant 0 : i32
    return %c0_i32, %c0_i32_0 : i32, i32
  }
  func.func @transform_1(%arg0: i32) -> (i32, i32) {
    %c0_i32 = arith.constant 0 : i32
    %c0_i32_0 = arith.constant 0 : i32
    %c0_i32_1 = arith.constant 0 : i32
    return %c0_i32, %c0_i32_0 : i32, i32
  }
  func.func @transform_2(%arg0: i32) -> (i32, i32) {
    %c0_i32 = arith.constant 0 : i32
    %c0_i32_0 = arith.constant 0 : i32
    %c0_i32_1 = arith.constant 0 : i32
    return %c0_i32, %c0_i32_0 : i32, i32
  }
  func.func @transform_3(%arg0: i32) -> (i32, i32) {
    %c0_i32 = arith.constant 0 : i32
    %c0_i32_0 = arith.constant 0 : i32
    %c0_i32_1 = arith.constant 0 : i32
    return %c0_i32, %c0_i32_0 : i32, i32
  }
  func.func @transform_4(%arg0: i32) -> (i32, i32) {
    %c0_i32 = arith.constant 0 : i32
    %c0_i32_0 = arith.constant 0 : i32
    %c0_i32_1 = arith.constant 0 : i32
    return %c0_i32, %c0_i32_0 : i32, i32
  }
}

</mosaic_0001>

<llo_original>
// kernel: tpu_custom_call.1
$region0: #{tpu_custom_call.1}
  #allocation0 [shape = 'u32[]', space=smem, size = 0x4, offset = 0x4, fixed_abs, tag = 'smem constant byte address 0x4 - core index']
  #allocation1 [shape = 'u32[144,128]{1,0:T(1,128)}', space=vmem, size = 0x12000, scoped, tag = 'internal scratch']
  %s0 = inlined_call_operand.hbm [shape: f32[16,16], index: 0, kind: input, shape index: {}]
  %s1 = inlined_call_operand.hbm [shape: f32[16,128], index: 1, kind: input, shape index: {}]
  %s2 = inlined_call_operand.vmem [shape: f32[1,128], index: 2, kind: input, shape index: {}]
  %s3 = inlined_call_operand.hbm [shape: f32[32,128], index: 3, kind: input, shape index: {}]
  %s4 = inlined_call_operand.hbm [shape: f32[16,32], index: 4, kind: output, shape index: {}]
  %s5 = sld [smem:[#allocation0]]
  $region38: #{tpu_custom_call.1} parent=0
    _
  %s7 = ssub.s32 1, %s5
  %s8 = scalar_select 0, %s7, %s5
  $region1: #{tpu_custom_call.1} parent=0
    #allocation2 [shape = 'u8[8192]{0}', space=vmem, size = 0x2000, scoped, tag = 'input window, operand 0, single buffered']
    #allocation3 [shape = 's32[1]{0}', space=sflag, size = 0x4, scoped, tag = 'scoped memory for tpu_custom_call.1']
    #allocation4 [shape = 's32[1]{0}', space=sflag, size = 0x4, scoped, tag = 'scoped memory for tpu_custom_call.1']
    #allocation5 [shape = 'u8[8192]{0}', space=vmem, size = 0x2000, scoped, tag = 'input window, operand 1, single buffered']
    #allocation6 [shape = 's32[1]{0}', space=sflag, size = 0x4, scoped, tag = 'scoped memory for tpu_custom_call.1']
    #allocation7 [shape = 'u8[16384]{0}', space=vmem, size = 0x4000, scoped, tag = 'input window, operand 3, single buffered']
    #allocation8 [shape = 'u8[8192]{0}', space=vmem, size = 0x2000, scoped, tag = 'output window, operand 0, single buffered']
    %9 = vsyncpa [#allocation3], 0
    %10 = vsyncpa [#allocation6], 0
    %11 = vsyncpa [#allocation4], 0
    // Predicated region
    $region2: #{tpu_custom_call.1} parent=1 // pred_check
      _
    $region3: #{tpu_custom_call.1} parent=1 // pred_check_branch
      %13 = sbr.rel (0) target = $region5
    $region4: #{tpu_custom_call.1} parent=1 // pred_region
      %s15 = ssub.s32 256, 256
      %16 = vsyncadd [#allocation3], %s15
      %s17 = sshll.u32 [#allocation2], 4
      %s18 = int_to_ptr.vmem [resolvable:$true] %s17
      %23 = dma.hbm_to_vmem [thread:$0]  %s0, 256, %s18, [#allocation3], 128, 128, 8
    $region5: #{tpu_custom_call.1} parent=1 // pred_fallthru
      _
    // Predicated region
    $region6: #{tpu_custom_call.1} parent=1 // pred_check
      _
    $region7: #{tpu_custom_call.1} parent=1 // pred_check_branch
      %25 = sbr.rel (0) target = $region9
    $region8: #{tpu_custom_call.1} parent=1 // pred_region
      %s27 = ssub.s32 256, 256
      %28 = vsyncadd [#allocation6], %s27
      %s29 = sshll.u32 [#allocation5], 4
      %s30 = int_to_ptr.vmem [resolvable:$true] %s29
      %35 = dma.hbm_to_vmem [thread:$0]  %s1, 256, %s30, [#allocation6], 128, 128, 8
    $region9: #{tpu_custom_call.1} parent=1 // pred_fallthru
      _
    // Predicated region
    $region10: #{tpu_custom_call.1} parent=1 // pred_check
      _
    $region11: #{tpu_custom_call.1} parent=1 // pred_check_branch
      %37 = sbr.rel (0) target = $region13
    $region12: #{tpu_custom_call.1} parent=1 // pred_region
      _
    $region13: #{tpu_custom_call.1} parent=1 // pred_fallthru
      _
    // Predicated region
    $region14: #{tpu_custom_call.1} parent=1 // pred_check
      _
    $region15: #{tpu_custom_call.1} parent=1 // pred_check_branch
      %39 = sbr.rel (0) target = $region17
    $region16: #{tpu_custom_call.1} parent=1 // pred_region
      %s41 = ssub.s32 512, 512
      %42 = vsyncadd [#allocation6], %s41
      %s43 = sshll.u32 [#allocation7], 4
      %s44 = int_to_ptr.vmem [resolvable:$true] %s43
      %49 = dma.hbm_to_vmem [thread:$0]  %s3, 512, %s44, [#allocation6], 128, 128, 8
    $region17: #{tpu_custom_call.1} parent=1 // pred_fallthru
      _
    // Predicated region
    $region18: #{tpu_custom_call.1} parent=1 // pred_check
      _
    $region19: #{tpu_custom_call.1} parent=1 // pred_check_branch
      %51 = sbr.rel (0) target = $region21
    $region20: #{tpu_custom_call.1} parent=1 // pred_region
      %52 = dma.done [#allocation3], 256
    $region21: #{tpu_custom_call.1} parent=1 // pred_fallthru
      _
    // Predicated region
    $region22: #{tpu_custom_call.1} parent=1 // pred_check
      _
    $region23: #{tpu_custom_call.1} parent=1 // pred_check_branch
      %54 = sbr.rel (0) target = $region25
    $region24: #{tpu_custom_call.1} parent=1 // pred_region
      %55 = dma.done [#allocation6], 256
    $region25: #{tpu_custom_call.1} parent=1 // pred_fallthru
      _
    // Predicated region
    $region26: #{tpu_custom_call.1} parent=1 // pred_check
      _
    $region27: #{tpu_custom_call.1} parent=1 // pred_check_branch
      %57 = sbr.rel (0) target = $region29
    $region28: #{tpu_custom_call.1} parent=1 // pred_region
      %58 = dma.done [#allocation6], 512
    $region29: #{tpu_custom_call.1} parent=1 // pred_fallthru
      _
    %v59 = vld [vmem:[#allocation2] sm:$0xff]
    %v60 = vld [vmem:[#allocation2 + $0x8] sm:$0xff]
    %v61 = vld [vmem:[#allocation5] sm:$0xff]
    %v62 = vld [vmem:[#allocation5 + $0x8] sm:$0xff]
    %v63 = vld [vmem:[%s2] sm:$0x1]
    %v65 = vlaneseq
    %v66 = vshrl.u32 %v65, 7
    %v67 = vsub.s32 0, %v66
    %v68 = vrot.slane %v63, %v67
    %vm70 = vcmask 130048
    %v72 = vsel %vm70, %v59, 0
    %v75 = vsel %vm70, %v60, 0
    %77 = vmatprep.subr.mxu0 0.0
    %78 = vmatpush1.msra.mxu0 %v61
    %79 = vmatprep.subr.mxu0 0.0
    %80 = vmatpush1.msra.mxu0 %v62
    %81 = vmatprep.subr.mxu0 0.0
    %82 = vmatpush1.msra.mxu0 0.0
    %83 = vmatprep.subr.mxu0 0.0
    %84 = vmatpush1.msra.mxu0 0.0
    %85 = vmatprep.subr.mxu0 0.0
    %86 = vmatpush1.msra.mxu0 0.0
    %87 = vmatprep.subr.mxu0 0.0
    %88 = vmatpush1.msra.mxu0 0.0
    %89 = vmatprep.subr.mxu0 0.0
    %90 = vmatpush1.msra.mxu0 0.0
    %91 = vmatprep.subr.mxu0 0.0
    %92 = vmatpush1.msra.mxu0 0.0
    %93 = vmatprep.subr.mxu0 0.0
    %94 = vmatpush1.msra.mxu0 0.0
    %95 = vmatprep.subr.mxu0 0.0
    %96 = vmatpush1.msra.mxu0 0.0
    %97 = vmatprep.subr.mxu0 0.0
    %98 = vmatpush1.msra.mxu0 0.0
    %99 = vmatprep.subr.mxu0 0.0
    %100 = vmatpush1.msra.mxu0 0.0
    %101 = vmatprep.subr.mxu0 0.0
    %102 = vmatpush1.msra.mxu0 0.0
    %103 = vmatprep.subr.mxu0 0.0
    %104 = vmatpush1.msra.mxu0 0.0
    %105 = vmatprep.subr.mxu0 0.0
    %106 = vmatpush1.msra.mxu0 0.0
    %107 = vmatprep.subr.mxu0 0.0
    %108 = vmatpush1.msra.mxu0 0.0
    %109 = vmatprep.subr.mxu0 0.0
    %110 = vmatpush1.msra.mxu0 0.0
    %111 = vmatprep.subr.mxu0 0.0
    %112 = vmatpush1.msra.mxu0 0.0
    %113 = vmatprep.subr.mxu0 0.0
    %114 = vmatpush1.msra.mxu0 0.0
    %115 = vmatprep.subr.mxu0 0.0
    %116 = vmatpush1.msra.mxu0 0.0
    %117 = vmatprep.subr.mxu0 0.0
    %118 = vmatpush1.msra.mxu0 0.0
    %119 = vmatprep.subr.mxu0 0.0
    %120 = vmatpush1.msra.mxu0 0.0
    %121 = vmatprep.subr.mxu0 0.0
    %122 = vmatpush1.msra.mxu0 0.0
    %123 = vmatprep.subr.mxu0 0.0
    %124 = vmatpush1.msra.mxu0 0.0
    %125 = vmatprep.subr.mxu0 0.0
    %126 = vmatpush1.msra.mxu0 0.0
    %127 = vmatprep.subr.mxu0 0.0
    %128 = vmatpush1.msra.mxu0 0.0
    %129 = vmatprep.subr.mxu0 0.0
    %130 = vmatpush1.msra.mxu0 0.0
    %131 = vmatprep.subr.mxu0 0.0
    %132 = vmatpush1.msra.mxu0 0.0
    %133 = vmatprep.subr.mxu0 0.0
    %134 = vmatpush1.msra.mxu0 0.0
    %135 = vmatprep.subr.mxu0 0.0
    %136 = vmatpush1.msra.mxu0 0.0
    %137 = vmatprep.subr.mxu0 0.0
    %138 = vmatpush1.msra.mxu0 0.0
    %139 = vmatprep.subr.mxu0 0.0
    %140 = vmatpush1.msra.mxu0 0.0
    %141 = vmatprep.mubr.f32.mxu0 0.0
    %142 = vmatmul.mubr.f32.gmra.mrb[0].mxu0 %v72
    %v143 = vpop.f32.mrb[0].mxu0
    %v144 = vadd.f32 %v68, %v143
    %v145 = vpop.f32.mrb[0].mxu0
    %146 = vmatprep.mubr.f32.mxu0 0.0
    %147 = vmatmul.mubr.f32.gmra.mrb[0].mxu0 %v75
    %v148 = vpop.f32.mrb[0].mxu0
    %v149 = vadd.f32 %v68, %v148
    %v150 = vpop.f32.mrb[0].mxu0
    %151 = vdwg.mxu0
    %v152 = vld [vmem:[#allocation7] sm:$0xff]
    %v153 = vld [vmem:[#allocation7 + $0x8] sm:$0xff]
    %v154 = vld [vmem:[#allocation7 + $0x10] sm:$0xff]
    %v155 = vld [vmem:[#allocation7 + $0x18] sm:$0xff]
    %v157 = vsel %vm70, 0.0, 0
    %159 = vmatprep.subr.mxu0 0.0
    %160 = vmatpush1.msra.mxu0 %v154
    %161 = vmatprep.subr.mxu0 0.0
    %162 = vmatpush1.msra.mxu0 %v155
    %163 = vmatprep.subr.mxu0 0.0
    %164 = vmatpush1.msra.mxu0 0.0
    %165 = vmatprep.subr.mxu0 0.0
    %166 = vmatpush1.msra.mxu0 0.0
    %167 = vmatprep.subr.mxu0 0.0
    %168 = vmatpush1.msra.mxu0 0.0
    %169 = vmatprep.subr.mxu0 0.0
    %170 = vmatpush1.msra.mxu0 0.0
    %171 = vmatprep.subr.mxu0 0.0
    %172 = vmatpush1.msra.mxu0 0.0
    %173 = vmatprep.subr.mxu0 0.0
    %174 = vmatpush1.msra.mxu0 0.0
    %175 = vmatprep.subr.mxu0 0.0
    %176 = vmatpush1.msra.mxu0 0.0
    %177 = vmatprep.subr.mxu0 0.0
    %178 = vmatpush1.msra.mxu0 0.0
    %179 = vmatprep.subr.mxu0 0.0
    %180 = vmatpush1.msra.mxu0 0.0
    %181 = vmatprep.subr.mxu0 0.0
    %182 = vmatpush1.msra.mxu0 0.0
    %183 = vmatprep.subr.mxu0 0.0
    %184 = vmatpush1.msra.mxu0 0.0
    %185 = vmatprep.subr.mxu0 0.0
    %186 = vmatpush1.msra.mxu0 0.0
    %187 = vmatprep.subr.mxu0 0.0
    %188 = vmatpush1.msra.mxu0 0.0
    %189 = vmatprep.subr.mxu0 0.0
    %190 = vmatpush1.msra.mxu0 0.0
    %191 = vmatprep.subr.mxu0 0.0
    %192 = vmatpush1.msra.mxu0 0.0
    %193 = vmatprep.subr.mxu0 0.0
    %194 = vmatpush1.msra.mxu0 0.0
    %195 = vmatprep.subr.mxu0 0.0
    %196 = vmatpush1.msra.mxu0 0.0
    %197 = vmatprep.subr.mxu0 0.0
    %198 = vmatpush1.msra.mxu0 0.0
    %199 = vmatprep.subr.mxu0 0.0
    %200 = vmatpush1.msra.mxu0 0.0
    %201 = vmatprep.subr.mxu0 0.0
    %202 = vmatpush1.msra.mxu0 0.0
    %203 = vmatprep.subr.mxu0 0.0
    %204 = vmatpush1.msra.mxu0 0.0
    %205 = vmatprep.subr.mxu0 0.0
    %206 = vmatpush1.msra.mxu0 0.0
    %207 = vmatprep.subr.mxu0 0.0
    %208 = vmatpush1.msra.mxu0 0.0
    %209 = vmatprep.subr.mxu0 0.0
    %210 = vmatpush1.msra.mxu0 0.0
    %211 = vmatprep.subr.mxu0 0.0
    %212 = vmatpush1.msra.mxu0 0.0
    %213 = vmatprep.subr.mxu0 0.0
    %214 = vmatpush1.msra.mxu0 0.0
    %215 = vmatprep.subr.mxu0 0.0
    %216 = vmatpush1.msra.mxu0 0.0
    %217 = vmatprep.subr.mxu0 0.0
    %218 = vmatpush1.msra.mxu0 0.0
    %219 = vmatprep.subr.mxu0 0.0
    %220 = vmatpush1.msra.mxu0 0.0
    %221 = vmatprep.subr.mxu0 0.0
    %222 = vmatpush1.msra.mxu0 0.0
    %223 = vmatprep.mubr.f32.mxu0 0.0
    %224 = vmatmul.mubr.f32.gmra.mrb[0].mxu0 %v157
    %v225 = vpop.f32.mrb[0].mxu0
    %v226 = vadd.f32 0.0, %v225
    %v227 = vpop.f32.mrb[0].mxu0
    %228 = vdwg.mxu0
    %229 = vmatprep.subr.mxu0 0.0
    %230 = vmatpush1.msra.mxu0 %v152
    %231 = vmatprep.subr.mxu0 0.0
    %232 = vmatpush1.msra.mxu0 %v153
    %233 = vmatprep.subr.mxu0 0.0
    %234 = vmatpush1.msra.mxu0 0.0
    %235 = vmatprep.subr.mxu0 0.0
    %236 = vmatpush1.msra.mxu0 0.0
    %237 = vmatprep.subr.mxu0 0.0
    %238 = vmatpush1.msra.mxu0 0.0
    %239 = vmatprep.subr.mxu0 0.0
    %240 = vmatpush1.msra.mxu0 0.0
    %241 = vmatprep.subr.mxu0 0.0
    %242 = vmatpush1.msra.mxu0 0.0
    %243 = vmatprep.subr.mxu0 0.0
    %244 = vmatpush1.msra.mxu0 0.0
    %245 = vmatprep.subr.mxu0 0.0
    %246 = vmatpush1.msra.mxu0 0.0
    %247 = vmatprep.subr.mxu0 0.0
    %248 = vmatpush1.msra.mxu0 0.0
    %249 = vmatprep.subr.mxu0 0.0
    %250 = vmatpush1.msra.mxu0 0.0
    %251 = vmatprep.subr.mxu0 0.0
    %252 = vmatpush1.msra.mxu0 0.0
    %253 = vmatprep.subr.mxu0 0.0
    %254 = vmatpush1.msra.mxu0 0.0
    %255 = vmatprep.subr.mxu0 0.0
    %256 = vmatpush1.msra.mxu0 0.0
    %257 = vmatprep.subr.mxu0 0.0
    %258 = vmatpush1.msra.mxu0 0.0
    %259 = vmatprep.subr.mxu0 0.0
    %260 = vmatpush1.msra.mxu0 0.0
    %261 = vmatprep.subr.mxu0 0.0
    %262 = vmatpush1.msra.mxu0 0.0
    %263 = vmatprep.subr.mxu0 0.0
    %264 = vmatpush1.msra.mxu0 0.0
    %265 = vmatprep.subr.mxu0 0.0
    %266 = vmatpush1.msra.mxu0 0.0
    %267 = vmatprep.subr.mxu0 0.0
    %268 = vmatpush1.msra.mxu0 0.0
    %269 = vmatprep.subr.mxu0 0.0
    %270 = vmatpush1.msra.mxu0 0.0
    %271 = vmatprep.subr.mxu0 0.0
    %272 = vmatpush1.msra.mxu0 0.0
    %273 = vmatprep.subr.mxu0 0.0
    %274 = vmatpush1.msra.mxu0 0.0
    %275 = vmatprep.subr.mxu0 0.0
    %276 = vmatpush1.msra.mxu0 0.0
    %277 = vmatprep.subr.mxu0 0.0
    %278 = vmatpush1.msra.mxu0 0.0
    %279 = vmatprep.subr.mxu0 0.0
    %280 = vmatpush1.msra.mxu0 0.0
    %281 = vmatprep.subr.mxu0 0.0
    %282 = vmatpush1.msra.mxu0 0.0
    %283 = vmatprep.subr.mxu0 0.0
    %284 = vmatpush1.msra.mxu0 0.0
    %285 = vmatprep.subr.mxu0 0.0
    %286 = vmatpush1.msra.mxu0 0.0
    %287 = vmatprep.subr.mxu0 0.0
    %288 = vmatpush1.msra.mxu0 0.0
    %289 = vmatprep.subr.mxu0 0.0
    %290 = vmatpush1.msra.mxu0 0.0
    %291 = vmatprep.subr.mxu0 0.0
    %292 = vmatpush1.msra.mxu0 0.0
    %293 = vmatprep.mubr.f32.mxu0 0.0
    %294 = vmatmul.mubr.f32.gmra.mrb[0].mxu0 %v157
    %v295 = vpop.f32.mrb[0].mxu0
    %v296 = vadd.f32 %v226, %v295
    %v297 = vpop.f32.mrb[0].mxu0
    %298 = vdwg.mxu0
    %v299 = vadd.f32 %v144, %v296
    %v300 = vxor.u32 %v299, 2147483648
    %v301 = vmul.f32 %v300, 1.442695
    %v302 = vpow.pop %v301
    %v303 = vadd.f32 %v302, 1.0
    %v304 = vrcp.pop %v303
    %v305 = vmul.f32 1.0, %v304
    %v306 = vtanh.pop %v299
    %v307 = vmul.f32 %v305, 0.0
    %309 = vrot.lane.b32.xlu0 %v306, 96
    %v310 = vpop.permute.xlu0 %309
    %v312 = vmul.f32 %v305, %v310
    %314 = vrot.lane.b32.xlu0 %v312, 16
    %v315 = vpop.permute.xlu0 %314
    %v317 = vadd.f32 %v307, %v315
    %v318 = vtanh.pop %v317
    %320 = vrot.lane.b32.xlu0 %v318, 32
    %v321 = vpop.permute.xlu0 %320
    %v323 = vmul.f32 %v305, %v321
    %v325 = vrot.slane %v296, 2
    %v327 = vadd.f32 %v149, %v325
    %v328 = vxor.u32 %v327, 2147483648
    %v329 = vmul.f32 %v328, 1.442695
    %v330 = vpow.pop %v329
    %v331 = vadd.f32 %v330, 1.0
    %v332 = vrcp.pop %v331
    %v333 = vmul.f32 1.0, %v332
    %v334 = vtanh.pop %v327
    %v335 = vmul.f32 %v333, 0.0
    %337 = vrot.lane.b32.xlu0 %v334, 96
    %v338 = vpop.permute.xlu0 %337
    %v340 = vmul.f32 %v333, %v338
    %342 = vrot.lane.b32.xlu0 %v340, 16
    %v343 = vpop.permute.xlu0 %342
    %v345 = vadd.f32 %v335, %v343
    %v346 = vtanh.pop %v345
    %348 = vrot.lane.b32.xlu0 %v346, 32
    %v349 = vpop.permute.xlu0 %348
    %v351 = vmul.f32 %v333, %v349
    %353 = vrot.lane.b32.xlu0 %v323, 80
    %v354 = vpop.permute.xlu0 %353
    %vm356 = vcmask 123904
    %357 = vst.msk [vmem:[#allocation8] sm:$0x3] %vm356, %v354
    %359 = vrot.lane.b32.xlu0 %v351, 32
    %v360 = vpop.permute.xlu0 %359
    %vm362 = vcmask 261254
    %363 = vst.msk [vmem:[#allocation8 + $0x8] sm:$0xc0] %vm362, %v360
    %v364 = vrot.slane %v351, 6
    %365 = vrot.lane.b32.xlu0 %v364, 16
    %v366 = vpop.permute.xlu0 %365
    %v367 = vsel %vm70, %v366, 0
    %369 = vmatprep.subr.mxu0 0.0
    %370 = vmatpush1.msra.mxu0 %v154
    %371 = vmatprep.subr.mxu0 0.0
    %372 = vmatpush1.msra.mxu0 %v155
    %373 = vmatprep.subr.mxu0 0.0
    %374 = vmatpush1.msra.mxu0 0.0
    %375 = vmatprep.subr.mxu0 0.0
    %376 = vmatpush1.msra.mxu0 0.0
    %377 = vmatprep.subr.mxu0 0.0
    %378 = vmatpush1.msra.mxu0 0.0
    %379 = vmatprep.subr.mxu0 0.0
    %380 = vmatpush1.msra.mxu0 0.0
    %381 = vmatprep.subr.mxu0 0.0
    %382 = vmatpush1.msra.mxu0 0.0
    %383 = vmatprep.subr.mxu0 0.0
    %384 = vmatpush1.msra.mxu0 0.0
    %385 = vmatprep.subr.mxu0 0.0
    %386 = vmatpush1.msra.mxu0 0.0
    %387 = vmatprep.subr.mxu0 0.0
    %388 = vmatpush1.msra.mxu0 0.0
    %389 = vmatprep.subr.mxu0 0.0
    %390 = vmatpush1.msra.mxu0 0.0
    %391 = vmatprep.subr.mxu0 0.0
    %392 = vmatpush1.msra.mxu0 0.0
    %393 = vmatprep.subr.mxu0 0.0
    %394 = vmatpush1.msra.mxu0 0.0
    %395 = vmatprep.subr.mxu0 0.0
    %396 = vmatpush1.msra.mxu0 0.0
    %397 = vmatprep.subr.mxu0 0.0
    %398 = vmatpush1.msra.mxu0 0.0
    %399 = vmatprep.subr.mxu0 0.0
    %400 = vmatpush1.msra.mxu0 0.0
    %401 = vmatprep.subr.mxu0 0.0
    %402 = vmatpush1.msra.mxu0 0.0
    %403 = vmatprep.subr.mxu0 0.0
    %404 = vmatpush1.msra.mxu0 0.0
    %405 = vmatprep.subr.mxu0 0.0
    %406 = vmatpush1.msra.mxu0 0.0
    %407 = vmatprep.subr.mxu0 0.0
    %408 = vmatpush1.msra.mxu0 0.0
    %409 = vmatprep.subr.mxu0 0.0
    %410 = vmatpush1.msra.mxu0 0.0
    %411 = vmatprep.subr.mxu0 0.0
    %412 = vmatpush1.msra.mxu0 0.0
    %413 = vmatprep.subr.mxu0 0.0
    %414 = vmatpush1.msra.mxu0 0.0
    %415 = vmatprep.subr.mxu0 0.0
    %416 = vmatpush1.msra.mxu0 0.0
    %417 = vmatprep.subr.mxu0 0.0
    %418 = vmatpush1.msra.mxu0 0.0
    %419 = vmatprep.subr.mxu0 0.0
    %420 = vmatpush1.msra.mxu0 0.0
    %421 = vmatprep.subr.mxu0 0.0
    %422 = vmatpush1.msra.mxu0 0.0
    %423 = vmatprep.subr.mxu0 0.0
    %424 = vmatpush1.msra.mxu0 0.0
    %425 = vmatprep.subr.mxu0 0.0
    %426 = vmatpush1.msra.mxu0 0.0
    %427 = vmatprep.subr.mxu0 0.0
    %428 = vmatpush1.msra.mxu0 0.0
    %429 = vmatprep.subr.mxu0 0.0
    %430 = vmatpush1.msra.mxu0 0.0
    %431 = vmatprep.subr.mxu0 0.0
    %432 = vmatpush1.msra.mxu0 0.0
    %433 = vmatprep.mubr.f32.mxu0 0.0
    %434 = vmatmul.mubr.f32.gmra.mrb[0].mxu0 %v367
    %v435 = vpop.f32.mrb[0].mxu0
    %v436 = vadd.f32 0.0, %v435
    %v437 = vpop.f32.mrb[0].mxu0
    %438 = vdwg.mxu0
    %v439 = vsel %vm70, %v354, 0
    %441 = vmatprep.subr.mxu0 0.0
    %442 = vmatpush1.msra.mxu0 %v152
    %443 = vmatprep.subr.mxu0 0.0
    %444 = vmatpush1.msra.mxu0 %v153
    %445 = vmatprep.subr.mxu0 0.0
    %446 = vmatpush1.msra.mxu0 0.0
    %447 = vmatprep.subr.mxu0 0.0
    %448 = vmatpush1.msra.mxu0 0.0
    %449 = vmatprep.subr.mxu0 0.0
    %450 = vmatpush1.msra.mxu0 0.0
    %451 = vmatprep.subr.mxu0 0.0
    %452 = vmatpush1.msra.mxu0 0.0
    %453 = vmatprep.subr.mxu0 0.0
    %454 = vmatpush1.msra.mxu0 0.0
    %455 = vmatprep.subr.mxu0 0.0
    %456 = vmatpush1.msra.mxu0 0.0
    %457 = vmatprep.subr.mxu0 0.0
    %458 = vmatpush1.msra.mxu0 0.0
    %459 = vmatprep.subr.mxu0 0.0
    %460 = vmatpush1.msra.mxu0 0.0
    %461 = vmatprep.subr.mxu0 0.0
    %462 = vmatpush1.msra.mxu0 0.0
    %463 = vmatprep.subr.mxu0 0.0
    %464 = vmatpush1.msra.mxu0 0.0
    %465 = vmatprep.subr.mxu0 0.0
    %466 = vmatpush1.msra.mxu0 0.0
    %467 = vmatprep.subr.mxu0 0.0
    %468 = vmatpush1.msra.mxu0 0.0
    %469 = vmatprep.subr.mxu0 0.0
    %470 = vmatpush1.msra.mxu0 0.0
    %471 = vmatprep.subr.mxu0 0.0
    %472 = vmatpush1.msra.mxu0 0.0
    %473 = vmatprep.subr.mxu0 0.0
    %474 = vmatpush1.msra.mxu0 0.0
    %475 = vmatprep.subr.mxu0 0.0
    %476 = vmatpush1.msra.mxu0 0.0
    %477 = vmatprep.subr.mxu0 0.0
    %478 = vmatpush1.msra.mxu0 0.0
    %479 = vmatprep.subr.mxu0 0.0
    %480 = vmatpush1.msra.mxu0 0.0
    %481 = vmatprep.subr.mxu0 0.0
    %482 = vmatpush1.msra.mxu0 0.0
    %483 = vmatprep.subr.mxu0 0.0
    %484 = vmatpush1.msra.mxu0 0.0
    %485 = vmatprep.subr.mxu0 0.0
    %486 = vmatpush1.msra.mxu0 0.0
    %487 = vmatprep.subr.mxu0 0.0
    %488 = vmatpush1.msra.mxu0 0.0
    %489 = vmatprep.subr.mxu0 0.0
    %490 = vmatpush1.msra.mxu0 0.0
    %491 = vmatprep.subr.mxu0 0.0
    %492 = vmatpush1.msra.mxu0 0.0
    %493 = vmatprep.subr.mxu0 0.0
    %494 = vmatpush1.msra.mxu0 0.0
    %495 = vmatprep.subr.mxu0 0.0
    %496 = vmatpush1.msra.mxu0 0.0
    %497 = vmatprep.subr.mxu0 0.0
    %498 = vmatpush1.msra.mxu0 0.0
    %499 = vmatprep.subr.mxu0 0.0
    %500 = vmatpush1.msra.mxu0 0.0
    %501 = vmatprep.subr.mxu0 0.0
    %502 = vmatpush1.msra.mxu0 0.0
    %503 = vmatprep.subr.mxu0 0.0
    %504 = vmatpush1.msra.mxu0 0.0
    %505 = vmatprep.mubr.f32.mxu0 0.0
    %506 = vmatmul.mubr.f32.gmra.mrb[0].mxu0 %v439
    %v507 = vpop.f32.mrb[0].mxu0
    %v508 = vadd.f32 %v436, %v507
    %v509 = vpop.f32.mrb[0].mxu0
    %510 = vdwg.mxu0
    %v512 = vrot.slane %v508, 6
    %v514 = vadd.f32 %v144, %v512
    %v515 = vxor.u32 %v514, 2147483648
    %v516 = vmul.f32 %v515, 1.442695
    %v517 = vpow.pop %v516
    %v518 = vadd.f32 %v517, 1.0
    %v519 = vrcp.pop %v518
    %v520 = vmul.f32 1.0, %v519
    %v521 = vtanh.pop %v514
    %v523 = vrot.slane %v317, 6
    %v525 = vmul.f32 %v520, %v523
    %527 = vrot.lane.b32.xlu0 %v521, 96
    %v528 = vpop.permute.xlu0 %527
    %v530 = vmul.f32 %v520, %v528
    %532 = vrot.lane.b32.xlu0 %v530, 16
    %v533 = vpop.permute.xlu0 %532
    %v535 = vadd.f32 %v525, %v533
    %v536 = vtanh.pop %v535
    %538 = vrot.lane.b32.xlu0 %v536, 32
    %v539 = vpop.permute.xlu0 %538
    %v541 = vmul.f32 %v520, %v539
    %v542 = vrot.slane %v508, 4
    %v544 = vadd.f32 %v149, %v542
    %v545 = vxor.u32 %v544, 2147483648
    %v546 = vmul.f32 %v545, 1.442695
    %v547 = vpow.pop %v546
    %v548 = vadd.f32 %v547, 1.0
    %v549 = vrcp.pop %v548
    %v550 = vmul.f32 1.0, %v549
    %v551 = vtanh.pop %v544
    %v553 = vrot.slane %v345, 2
    %v555 = vmul.f32 %v550, %v553
    %557 = vrot.lane.b32.xlu0 %v551, 96
    %v558 = vpop.permute.xlu0 %557
    %v560 = vmul.f32 %v550, %v558
    %562 = vrot.lane.b32.xlu0 %v560, 16
    %v563 = vpop.permute.xlu0 %562
    %v565 = vadd.f32 %v555, %v563
    %v566 = vtanh.pop %v565
    %568 = vrot.lane.b32.xlu0 %v566, 32
    %v569 = vpop.permute.xlu0 %568
    %v571 = vmul.f32 %v550, %v569
    %573 = vrot.lane.b32.xlu0 %v541, 80
    %v574 = vpop.permute.xlu0 %573
    %vm576 = vcmask 125954
    %577 = vst.msk [vmem:[#allocation8] sm:$0xc] %vm576, %v574
    %579 = vrot.lane.b32.xlu0 %v571, 32
    %v580 = vpop.permute.xlu0 %579
    %vm582 = vcmask 259204
    %583 = vst.msk [vmem:[#allocation8 + $0x8] sm:$0x30] %vm582, %v580
    %v584 = vrot.slane %v571, 4
    %585 = vrot.lane.b32.xlu0 %v584, 16
    %v586 = vpop.permute.xlu0 %585
    %v587 = vsel %vm70, %v586, 0
    %589 = vmatprep.subr.mxu0 0.0
    %590 = vmatpush1.msra.mxu0 %v154
    %591 = vmatprep.subr.mxu0 0.0
    %592 = vmatpush1.msra.mxu0 %v155
    %593 = vmatprep.subr.mxu0 0.0
    %594 = vmatpush1.msra.mxu0 0.0
    %595 = vmatprep.subr.mxu0 0.0
    %596 = vmatpush1.msra.mxu0 0.0
    %597 = vmatprep.subr.mxu0 0.0
    %598 = vmatpush1.msra.mxu0 0.0
    %599 = vmatprep.subr.mxu0 0.0
    %600 = vmatpush1.msra.mxu0 0.0
    %601 = vmatprep.subr.mxu0 0.0
    %602 = vmatpush1.msra.mxu0 0.0
    %603 = vmatprep.subr.mxu0 0.0
    %604 = vmatpush1.msra.mxu0 0.0
    %605 = vmatprep.subr.mxu0 0.0
    %606 = vmatpush1.msra.mxu0 0.0
    %607 = vmatprep.subr.mxu0 0.0
    %608 = vmatpush1.msra.mxu0 0.0
    %609 = vmatprep.subr.mxu0 0.0
    %610 = vmatpush1.msra.mxu0 0.0
    %611 = vmatprep.subr.mxu0 0.0
    %612 = vmatpush1.msra.mxu0 0.0
    %613 = vmatprep.subr.mxu0 0.0
    %614 = vmatpush1.msra.mxu0 0.0
    %615 = vmatprep.subr.mxu0 0.0
    %616 = vmatpush1.msra.mxu0 0.0
    %617 = vmatprep.subr.mxu0 0.0
    %618 = vmatpush1.msra.mxu0 0.0
    %619 = vmatprep.subr.mxu0 0.0
    %620 = vmatpush1.msra.mxu0 0.0
    %621 = vmatprep.subr.mxu0 0.0
    %622 = vmatpush1.msra.mxu0 0.0
    %623 = vmatprep.subr.mxu0 0.0
    %624 = vmatpush1.msra.mxu0 0.0
    %625 = vmatprep.subr.mxu0 0.0
    %626 = vmatpush1.msra.mxu0 0.0
    %627 = vmatprep.subr.mxu0 0.0
    %628 = vmatpush1.msra.mxu0 0.0
    %629 = vmatprep.subr.mxu0 0.0
    %630 = vmatpush1.msra.mxu0 0.0
    %631 = vmatprep.subr.mxu0 0.0
    %632 = vmatpush1.msra.mxu0 0.0
    %633 = vmatprep.subr.mxu0 0.0
    %634 = vmatpush1.msra.mxu0 0.0
    %635 = vmatprep.subr.mxu0 0.0
    %636 = vmatpush1.msra.mxu0 0.0
    %637 = vmatprep.subr.mxu0 0.0
    %638 = vmatpush1.msra.mxu0 0.0
    %639 = vmatprep.subr.mxu0 0.0
    %640 = vmatpush1.msra.mxu0 0.0
    %641 = vmatprep.subr.mxu0 0.0
    %642 = vmatpush1.msra.mxu0 0.0
    %643 = vmatprep.subr.mxu0 0.0
    %644 = vmatpush1.msra.mxu0 0.0
    %645 = vmatprep.subr.mxu0 0.0
    %646 = vmatpush1.msra.mxu0 0.0
    %647 = vmatprep.subr.mxu0 0.0
    %648 = vmatpush1.msra.mxu0 0.0
    %649 = vmatprep.subr.mxu0 0.0
    %650 = vmatpush1.msra.mxu0 0.0
    %651 = vmatprep.subr.mxu0 0.0
    %652 = vmatpush1.msra.mxu0 0.0
    %653 = vmatprep.mubr.f32.mxu0 0.0
    %654 = vmatmul.mubr.f32.gmra.mrb[0].mxu0 %v587
    %v655 = vpop.f32.mrb[0].mxu0
    %v656 = vadd.f32 0.0, %v655
    %v657 = vpop.f32.mrb[0].mxu0
    %658 = vdwg.mxu0
    %v659 = vrot.slane %v541, 2
    %660 = vrot.lane.b32.xlu0 %v659, 80
    %v661 = vpop.permute.xlu0 %660
    %v662 = vsel %vm70, %v661, 0
    %664 = vmatprep.subr.mxu0 0.0
    %665 = vmatpush1.msra.mxu0 %v152
    %666 = vmatprep.subr.mxu0 0.0
    %667 = vmatpush1.msra.mxu0 %v153
    %668 = vmatprep.subr.mxu0 0.0
    %669 = vmatpush1.msra.mxu0 0.0
    %670 = vmatprep.subr.mxu0 0.0
    %671 = vmatpush1.msra.mxu0 0.0
    %672 = vmatprep.subr.mxu0 0.0
    %673 = vmatpush1.msra.mxu0 0.0
    %674 = vmatprep.subr.mxu0 0.0
    %675 = vmatpush1.msra.mxu0 0.0
    %676 = vmatprep.subr.mxu0 0.0
    %677 = vmatpush1.msra.mxu0 0.0
    %678 = vmatprep.subr.mxu0 0.0
    %679 = vmatpush1.msra.mxu0 0.0
    %680 = vmatprep.subr.mxu0 0.0
    %681 = vmatpush1.msra.mxu0 0.0
    %682 = vmatprep.subr.mxu0 0.0
    %683 = vmatpush1.msra.mxu0 0.0
    %684 = vmatprep.subr.mxu0 0.0
    %685 = vmatpush1.msra.mxu0 0.0
    %686 = vmatprep.subr.mxu0 0.0
    %687 = vmatpush1.msra.mxu0 0.0
    %688 = vmatprep.subr.mxu0 0.0
    %689 = vmatpush1.msra.mxu0 0.0
    %690 = vmatprep.subr.mxu0 0.0
    %691 = vmatpush1.msra.mxu0 0.0
    %692 = vmatprep.subr.mxu0 0.0
    %693 = vmatpush1.msra.mxu0 0.0
    %694 = vmatprep.subr.mxu0 0.0
    %695 = vmatpush1.msra.mxu0 0.0
    %696 = vmatprep.subr.mxu0 0.0
    %697 = vmatpush1.msra.mxu0 0.0
    %698 = vmatprep.subr.mxu0 0.0
    %699 = vmatpush1.msra.mxu0 0.0
    %700 = vmatprep.subr.mxu0 0.0
    %701 = vmatpush1.msra.mxu0 0.0
    %702 = vmatprep.subr.mxu0 0.0
    %703 = vmatpush1.msra.mxu0 0.0
    %704 = vmatprep.subr.mxu0 0.0
    %705 = vmatpush1.msra.mxu0 0.0
    %706 = vmatprep.subr.mxu0 0.0
    %707 = vmatpush1.msra.mxu0 0.0
    %708 = vmatprep.subr.mxu0 0.0
    %709 = vmatpush1.msra.mxu0 0.0
    %710 = vmatprep.subr.mxu0 0.0
    %711 = vmatpush1.msra.mxu0 0.0
    %712 = vmatprep.subr.mxu0 0.0
    %713 = vmatpush1.msra.mxu0 0.0
    %714 = vmatprep.subr.mxu0 0.0
    %715 = vmatpush1.msra.mxu0 0.0
    %716 = vmatprep.subr.mxu0 0.0
    %717 = vmatpush1.msra.mxu0 0.0
    %718 = vmatprep.subr.mxu0 0.0
    %719 = vmatpush1.msra.mxu0 0.0
    %720 = vmatprep.subr.mxu0 0.0
    %721 = vmatpush1.msra.mxu0 0.0
    %722 = vmatprep.subr.mxu0 0.0
    %723 = vmatpush1.msra.mxu0 0.0
    %724 = vmatprep.subr.mxu0 0.0
    %725 = vmatpush1.msra.mxu0 0.0
    %726 = vmatprep.subr.mxu0 0.0
    %727 = vmatpush1.msra.mxu0 0.0
    %728 = vmatprep.mubr.f32.mxu0 0.0
    %729 = vmatmul.mubr.f32.gmra.mrb[0].mxu0 %v662
    %v730 = vpop.f32.mrb[0].mxu0
    %v731 = vadd.f32 %v656, %v730
    %v732 = vpop.f32.mrb[0].mxu0
    %733 = vdwg.mxu0
    %v735 = vrot.slane %v731, 4
    %v737 = vadd.f32 %v144, %v735
    %v738 = vxor.u32 %v737, 2147483648
    %v739 = vmul.f32 %v738, 1.442695
    %v740 = vpow.pop %v739
    %v741 = vadd.f32 %v740, 1.0
    %v742 = vrcp.pop %v741
    %v743 = vmul.f32 1.0, %v742
    %v744 = vtanh.pop %v737
    %v746 = vrot.slane %v535, 6
    %v748 = vmul.f32 %v743, %v746
    %750 = vrot.lane.b32.xlu0 %v744, 96
    %v751 = vpop.permute.xlu0 %750
    %v753 = vmul.f32 %v743, %v751
    %755 = vrot.lane.b32.xlu0 %v753, 16
    %v756 = vpop.permute.xlu0 %755
    %v758 = vadd.f32 %v748, %v756
    %v759 = vtanh.pop %v758
    %761 = vrot.lane.b32.xlu0 %v759, 32
    %v762 = vpop.permute.xlu0 %761
    %v764 = vmul.f32 %v743, %v762
    %v765 = vrot.slane %v731, 6
    %v767 = vadd.f32 %v149, %v765
    %v768 = vxor.u32 %v767, 2147483648
    %v769 = vmul.f32 %v768, 1.442695
    %v770 = vpow.pop %v769
    %v771 = vadd.f32 %v770, 1.0
    %v772 = vrcp.pop %v771
    %v773 = vmul.f32 1.0, %v772
    %v774 = vtanh.pop %v767
    %v776 = vrot.slane %v565, 2
    %v778 = vmul.f32 %v773, %v776
    %780 = vrot.lane.b32.xlu0 %v774, 96
    %v781 = vpop.permute.xlu0 %780
    %v783 = vmul.f32 %v773, %v781
    %785 = vrot.lane.b32.xlu0 %v783, 16
    %v786 = vpop.permute.xlu0 %785
    %v788 = vadd.f32 %v778, %v786
    %v789 = vtanh.pop %v788
    %791 = vrot.lane.b32.xlu0 %v789, 32
    %v792 = vpop.permute.xlu0 %791
    %v794 = vmul.f32 %v773, %v792
    %796 = vrot.lane.b32.xlu0 %v764, 80
    %v797 = vpop.permute.xlu0 %796
    %vm799 = vcmask 128004
    %800 = vst.msk [vmem:[#allocation8] sm:$0x30] %vm799, %v797
    %802 = vrot.lane.b32.xlu0 %v794, 32
    %v803 = vpop.permute.xlu0 %802
    %vm805 = vcmask 257154
    %806 = vst.msk [vmem:[#allocation8 + $0x8] sm:$0xc] %vm805, %v803
    %v807 = vrot.slane %v794, 2
    %808 = vrot.lane.b32.xlu0 %v807, 16
    %v809 = vpop.permute.xlu0 %808
    %v810 = vsel %vm70, %v809, 0
    %812 = vmatprep.subr.mxu0 0.0
    %813 = vmatpush1.msra.mxu0 %v154
    %814 = vmatprep.subr.mxu0 0.0
    %815 = vmatpush1.msra.mxu0 %v155
    %816 = vmatprep.subr.mxu0 0.0
    %817 = vmatpush1.msra.mxu0 0.0
    %818 = vmatprep.subr.mxu0 0.0
    %819 = vmatpush1.msra.mxu0 0.0
    %820 = vmatprep.subr.mxu0 0.0
    %821 = vmatpush1.msra.mxu0 0.0
    %822 = vmatprep.subr.mxu0 0.0
    %823 = vmatpush1.msra.mxu0 0.0
    %824 = vmatprep.subr.mxu0 0.0
    %825 = vmatpush1.msra.mxu0 0.0
    %826 = vmatprep.subr.mxu0 0.0
    %827 = vmatpush1.msra.mxu0 0.0
    %828 = vmatprep.subr.mxu0 0.0
    %829 = vmatpush1.msra.mxu0 0.0
    %830 = vmatprep.subr.mxu0 0.0
    %831 = vmatpush1.msra.mxu0 0.0
    %832 = vmatprep.subr.mxu0 0.0
    %833 = vmatpush1.msra.mxu0 0.0
    %834 = vmatprep.subr.mxu0 0.0
    %835 = vmatpush1.msra.mxu0 0.0
    %836 = vmatprep.subr.mxu0 0.0
    %837 = vmatpush1.msra.mxu0 0.0
    %838 = vmatprep.subr.mxu0 0.0
    %839 = vmatpush1.msra.mxu0 0.0
    %840 = vmatprep.subr.mxu0 0.0
    %841 = vmatpush1.msra.mxu0 0.0
    %842 = vmatprep.subr.mxu0 0.0
    %843 = vmatpush1.msra.mxu0 0.0
    %844 = vmatprep.subr.mxu0 0.0
    %845 = vmatpush1.msra.mxu0 0.0
    %846 = vmatprep.subr.mxu0 0.0
    %847 = vmatpush1.msra.mxu0 0.0
    %848 = vmatprep.subr.mxu0 0.0
    %849 = vmatpush1.msra.mxu0 0.0
    %850 = vmatprep.subr.mxu0 0.0
    %851 = vmatpush1.msra.mxu0 0.0
    %852 = vmatprep.subr.mxu0 0.0
    %853 = vmatpush1.msra.mxu0 0.0
    %854 = vmatprep.subr.mxu0 0.0
    %855 = vmatpush1.msra.mxu0 0.0
    %856 = vmatprep.subr.mxu0 0.0
    %857 = vmatpush1.msra.mxu0 0.0
    %858 = vmatprep.subr.mxu0 0.0
    %859 = vmatpush1.msra.mxu0 0.0
    %860 = vmatprep.subr.mxu0 0.0
    %861 = vmatpush1.msra.mxu0 0.0
    %862 = vmatprep.subr.mxu0 0.0
    %863 = vmatpush1.msra.mxu0 0.0
    %864 = vmatprep.subr.mxu0 0.0
    %865 = vmatpush1.msra.mxu0 0.0
    %866 = vmatprep.subr.mxu0 0.0
    %867 = vmatpush1.msra.mxu0 0.0
    %868 = vmatprep.subr.mxu0 0.0
    %869 = vmatpush1.msra.mxu0 0.0
    %870 = vmatprep.subr.mxu0 0.0
    %871 = vmatpush1.msra.mxu0 0.0
    %872 = vmatprep.subr.mxu0 0.0
    %873 = vmatpush1.msra.mxu0 0.0
    %874 = vmatprep.subr.mxu0 0.0
    %875 = vmatpush1.msra.mxu0 0.0
    %876 = vmatprep.mubr.f32.mxu0 0.0
    %877 = vmatmul.mubr.f32.gmra.mrb[0].mxu0 %v810
    %v878 = vpop.f32.mrb[0].mxu0
    %v879 = vadd.f32 0.0, %v878
    %v880 = vpop.f32.mrb[0].mxu0
    %881 = vdwg.mxu0
    %v882 = vrot.slane %v764, 4
    %883 = vrot.lane.b32.xlu0 %v882, 80
    %v884 = vpop.permute.xlu0 %883
    %v885 = vsel %vm70, %v884, 0
    %887 = vmatprep.subr.mxu0 0.0
    %888 = vmatpush1.msra.mxu0 %v152
    %889 = vmatprep.subr.mxu0 0.0
    %890 = vmatpush1.msra.mxu0 %v153
    %891 = vmatprep.subr.mxu0 0.0
    %892 = vmatpush1.msra.mxu0 0.0
    %893 = vmatprep.subr.mxu0 0.0
    %894 = vmatpush1.msra.mxu0 0.0
    %895 = vmatprep.subr.mxu0 0.0
    %896 = vmatpush1.msra.mxu0 0.0
    %897 = vmatprep.subr.mxu0 0.0
    %898 = vmatpush1.msra.mxu0 0.0
    %899 = vmatprep.subr.mxu0 0.0
    %900 = vmatpush1.msra.mxu0 0.0
    %901 = vmatprep.subr.mxu0 0.0
    %902 = vmatpush1.msra.mxu0 0.0
    %903 = vmatprep.subr.mxu0 0.0
    %904 = vmatpush1.msra.mxu0 0.0
    %905 = vmatprep.subr.mxu0 0.0
    %906 = vmatpush1.msra.mxu0 0.0
    %907 = vmatprep.subr.mxu0 0.0
    %908 = vmatpush1.msra.mxu0 0.0
    %909 = vmatprep.subr.mxu0 0.0
    %910 = vmatpush1.msra.mxu0 0.0
    %911 = vmatprep.subr.mxu0 0.0
    %912 = vmatpush1.msra.mxu0 0.0
    %913 = vmatprep.subr.mxu0 0.0
    %914 = vmatpush1.msra.mxu0 0.0
    %915 = vmatprep.subr.mxu0 0.0
    %916 = vmatpush1.msra.mxu0 0.0
    %917 = vmatprep.subr.mxu0 0.0
    %918 = vmatpush1.msra.mxu0 0.0
    %919 = vmatprep.subr.mxu0 0.0
    %920 = vmatpush1.msra.mxu0 0.0
    %921 = vmatprep.subr.mxu0 0.0
    %922 = vmatpush1.msra.mxu0 0.0
    %923 = vmatprep.subr.mxu0 0.0
    %924 = vmatpush1.msra.mxu0 0.0
    %925 = vmatprep.subr.mxu0 0.0
    %926 = vmatpush1.msra.mxu0 0.0
    %927 = vmatprep.subr.mxu0 0.0
    %928 = vmatpush1.msra.mxu0 0.0
    %929 = vmatprep.subr.mxu0 0.0
    %930 = vmatpush1.msra.mxu0 0.0
    %931 = vmatprep.subr.mxu0 0.0
    %932 = vmatpush1.msra.mxu0 0.0
    %933 = vmatprep.subr.mxu0 0.0
    %934 = vmatpush1.msra.mxu0 0.0
    %935 = vmatprep.subr.mxu0 0.0
    %936 = vmatpush1.msra.mxu0 0.0
    %937 = vmatprep.subr.mxu0 0.0
    %938 = vmatpush1.msra.mxu0 0.0
    %939 = vmatprep.subr.mxu0 0.0
    %940 = vmatpush1.msra.mxu0 0.0
    %941 = vmatprep.subr.mxu0 0.0
    %942 = vmatpush1.msra.mxu0 0.0
    %943 = vmatprep.subr.mxu0 0.0
    %944 = vmatpush1.msra.mxu0 0.0
    %945 = vmatprep.subr.mxu0 0.0
    %946 = vmatpush1.msra.mxu0 0.0
    %947 = vmatprep.subr.mxu0 0.0
    %948 = vmatpush1.msra.mxu0 0.0
    %949 = vmatprep.subr.mxu0 0.0
    %950 = vmatpush1.msra.mxu0 0.0
    %951 = vmatprep.mubr.f32.mxu0 0.0
    %952 = vmatmul.mubr.f32.gmra.mrb[0].mxu0 %v885
    %v953 = vpop.f32.mrb[0].mxu0
    %v954 = vadd.f32 %v879, %v953
    %v955 = vpop.f32.mrb[0].mxu0
    %956 = vdwg.mxu0
    %v958 = vrot.slane %v954, 2
    %v960 = vadd.f32 %v144, %v958
    %v961 = vxor.u32 %v960, 2147483648
    %v962 = vmul.f32 %v961, 1.442695
    %v963 = vpow.pop %v962
    %v964 = vadd.f32 %v963, 1.0
    %v965 = vrcp.pop %v964
    %v966 = vmul.f32 1.0, %v965
    %v967 = vtanh.pop %v960
    %v969 = vrot.slane %v758, 6
    %v971 = vmul.f32 %v966, %v969
    %973 = vrot.lane.b32.xlu0 %v967, 96
    %v974 = vpop.permute.xlu0 %973
    %v976 = vmul.f32 %v966, %v974
    %978 = vrot.lane.b32.xlu0 %v976, 16
    %v979 = vpop.permute.xlu0 %978
    %v981 = vadd.f32 %v971, %v979
    %v982 = vtanh.pop %v981
    %984 = vrot.lane.b32.xlu0 %v982, 32
    %v985 = vpop.permute.xlu0 %984
    %v987 = vmul.f32 %v966, %v985
    %v988 = vadd.f32 %v149, %v954
    %v989 = vxor.u32 %v988, 2147483648
    %v990 = vmul.f32 %v989, 1.442695
    %v991 = vpow.pop %v990
    %v992 = vadd.f32 %v991, 1.0
    %v993 = vrcp.pop %v992
    %v994 = vmul.f32 1.0, %v993
    %v995 = vtanh.pop %v988
    %v997 = vrot.slane %v788, 2
    %v999 = vmul.f32 %v994, %v997
    %1001 = vrot.lane.b32.xlu0 %v995, 96
    %v1002 = vpop.permute.xlu0 %1001
    %v1004 = vmul.f32 %v994, %v1002
    %1006 = vrot.lane.b32.xlu0 %v1004, 16
    %v1007 = vpop.permute.xlu0 %1006
    %v1009 = vadd.f32 %v999, %v1007
    %v1010 = vtanh.pop %v1009
    %1012 = vrot.lane.b32.xlu0 %v1010, 32
    %v1013 = vpop.permute.xlu0 %1012
    %v1015 = vmul.f32 %v994, %v1013
    %1017 = vrot.lane.b32.xlu0 %v987, 80
    %v1018 = vpop.permute.xlu0 %1017
    %vm1020 = vcmask 130054
    %1021 = vst.msk [vmem:[#allocation8] sm:$0xc0] %vm1020, %v1018
    %1023 = vrot.lane.b32.xlu0 %v1015, 32
    %v1024 = vpop.permute.xlu0 %1023
    %vm1026 = vcmask 255104
    %1027 = vst.msk [vmem:[#allocation8 + $0x8] sm:$0x3] %vm1026, %v1024
    %1028 = vrot.lane.b32.xlu0 %v1015, 16
    %v1029 = vpop.permute.xlu0 %1028
    %v1030 = vsel %vm70, %v1029, 0
    %1032 = vmatprep.subr.mxu0 0.0
    %1033 = vmatpush1.msra.mxu0 %v154
    %1034 = vmatprep.subr.mxu0 0.0
    %1035 = vmatpush1.msra.mxu0 %v155
    %1036 = vmatprep.subr.mxu0 0.0
    %1037 = vmatpush1.msra.mxu0 0.0
    %1038 = vmatprep.subr.mxu0 0.0
    %1039 = vmatpush1.msra.mxu0 0.0
    %1040 = vmatprep.subr.mxu0 0.0
    %1041 = vmatpush1.msra.mxu0 0.0
    %1042 = vmatprep.subr.mxu0 0.0
    %1043 = vmatpush1.msra.mxu0 0.0
    %1044 = vmatprep.subr.mxu0 0.0
    %1045 = vmatpush1.msra.mxu0 0.0
    %1046 = vmatprep.subr.mxu0 0.0
    %1047 = vmatpush1.msra.mxu0 0.0
    %1048 = vmatprep.subr.mxu0 0.0
    %1049 = vmatpush1.msra.mxu0 0.0
    %1050 = vmatprep.subr.mxu0 0.0
    %1051 = vmatpush1.msra.mxu0 0.0
    %1052 = vmatprep.subr.mxu0 0.0
    %1053 = vmatpush1.msra.mxu0 0.0
    %1054 = vmatprep.subr.mxu0 0.0
    %1055 = vmatpush1.msra.mxu0 0.0
    %1056 = vmatprep.subr.mxu0 0.0
    %1057 = vmatpush1.msra.mxu0 0.0
    %1058 = vmatprep.subr.mxu0 0.0
    %1059 = vmatpush1.msra.mxu0 0.0
    %1060 = vmatprep.subr.mxu0 0.0
    %1061 = vmatpush1.msra.mxu0 0.0
    %1062 = vmatprep.subr.mxu0 0.0
    %1063 = vmatpush1.msra.mxu0 0.0
    %1064 = vmatprep.subr.mxu0 0.0
    %1065 = vmatpush1.msra.mxu0 0.0
    %1066 = vmatprep.subr.mxu0 0.0
    %1067 = vmatpush1.msra.mxu0 0.0
    %1068 = vmatprep.subr.mxu0 0.0
    %1069 = vmatpush1.msra.mxu0 0.0
    %1070 = vmatprep.subr.mxu0 0.0
    %1071 = vmatpush1.msra.mxu0 0.0
    %1072 = vmatprep.subr.mxu0 0.0
    %1073 = vmatpush1.msra.mxu0 0.0
    %1074 = vmatprep.subr.mxu0 0.0
    %1075 = vmatpush1.msra.mxu0 0.0
    %1076 = vmatprep.subr.mxu0 0.0
    %1077 = vmatpush1.msra.mxu0 0.0
    %1078 = vmatprep.subr.mxu0 0.0
    %1079 = vmatpush1.msra.mxu0 0.0
    %1080 = vmatprep.subr.mxu0 0.0
    %1081 = vmatpush1.msra.mxu0 0.0
    %1082 = vmatprep.subr.mxu0 0.0
    %1083 = vmatpush1.msra.mxu0 0.0
    %1084 = vmatprep.subr.mxu0 0.0
    %1085 = vmatpush1.msra.mxu0 0.0
    %1086 = vmatprep.subr.mxu0 0.0
    %1087 = vmatpush1.msra.mxu0 0.0
    %1088 = vmatprep.subr.mxu0 0.0
    %1089 = vmatpush1.msra.mxu0 0.0
    %1090 = vmatprep.subr.mxu0 0.0
    %1091 = vmatpush1.msra.mxu0 0.0
    %1092 = vmatprep.subr.mxu0 0.0
    %1093 = vmatpush1.msra.mxu0 0.0
    %1094 = vmatprep.subr.mxu0 0.0
    %1095 = vmatpush1.msra.mxu0 0.0
    %1096 = vmatprep.mubr.f32.mxu0 0.0
    %1097 = vmatmul.mubr.f32.gmra.mrb[0].mxu0 %v1030
    %v1098 = vpop.f32.mrb[0].mxu0
    %v1099 = vadd.f32 0.0, %v1098
    %v1100 = vpop.f32.mrb[0].mxu0
    %1101 = vdwg.mxu0
    %v1102 = vrot.slane %v987, 6
    %1103 = vrot.lane.b32.xlu0 %v1102, 80
    %v1104 = vpop.permute.xlu0 %1103
    %v1105 = vsel %vm70, %v1104, 0
    %1107 = vmatprep.subr.mxu0 0.0
    %1108 = vmatpush1.msra.mxu0 %v152
    %1109 = vmatprep.subr.mxu0 0.0
    %1110 = vmatpush1.msra.mxu0 %v153
    %1111 = vmatprep.subr.mxu0 0.0
    %1112 = vmatpush1.msra.mxu0 0.0
    %1113 = vmatprep.subr.mxu0 0.0
    %1114 = vmatpush1.msra.mxu0 0.0
    %1115 = vmatprep.subr.mxu0 0.0
    %1116 = vmatpush1.msra.mxu0 0.0
    %1117 = vmatprep.subr.mxu0 0.0
    %1118 = vmatpush1.msra.mxu0 0.0
    %1119 = vmatprep.subr.mxu0 0.0
    %1120 = vmatpush1.msra.mxu0 0.0
    %1121 = vmatprep.subr.mxu0 0.0
    %1122 = vmatpush1.msra.mxu0 0.0
    %1123 = vmatprep.subr.mxu0 0.0
    %1124 = vmatpush1.msra.mxu0 0.0
    %1125 = vmatprep.subr.mxu0 0.0
    %1126 = vmatpush1.msra.mxu0 0.0
    %1127 = vmatprep.subr.mxu0 0.0
    %1128 = vmatpush1.msra.mxu0 0.0
    %1129 = vmatprep.subr.mxu0 0.0
    %1130 = vmatpush1.msra.mxu0 0.0
    %1131 = vmatprep.subr.mxu0 0.0
    %1132 = vmatpush1.msra.mxu0 0.0
    %1133 = vmatprep.subr.mxu0 0.0
    %1134 = vmatpush1.msra.mxu0 0.0
    %1135 = vmatprep.subr.mxu0 0.0
    %1136 = vmatpush1.msra.mxu0 0.0
    %1137 = vmatprep.subr.mxu0 0.0
    %1138 = vmatpush1.msra.mxu0 0.0
    %1139 = vmatprep.subr.mxu0 0.0
    %1140 = vmatpush1.msra.mxu0 0.0
    %1141 = vmatprep.subr.mxu0 0.0
    %1142 = vmatpush1.msra.mxu0 0.0
    %1143 = vmatprep.subr.mxu0 0.0
    %1144 = vmatpush1.msra.mxu0 0.0
    %1145 = vmatprep.subr.mxu0 0.0
    %1146 = vmatpush1.msra.mxu0 0.0
    %1147 = vmatprep.subr.mxu0 0.0
    %1148 = vmatpush1.msra.mxu0 0.0
    %1149 = vmatprep.subr.mxu0 0.0
    %1150 = vmatpush1.msra.mxu0 0.0
    %1151 = vmatprep.subr.mxu0 0.0
    %1152 = vmatpush1.msra.mxu0 0.0
    %1153 = vmatprep.subr.mxu0 0.0
    %1154 = vmatpush1.msra.mxu0 0.0
    %1155 = vmatprep.subr.mxu0 0.0
    %1156 = vmatpush1.msra.mxu0 0.0
    %1157 = vmatprep.subr.mxu0 0.0
    %1158 = vmatpush1.msra.mxu0 0.0
    %1159 = vmatprep.subr.mxu0 0.0
    %1160 = vmatpush1.msra.mxu0 0.0
    %1161 = vmatprep.subr.mxu0 0.0
    %1162 = vmatpush1.msra.mxu0 0.0
    %1163 = vmatprep.subr.mxu0 0.0
    %1164 = vmatpush1.msra.mxu0 0.0
    %1165 = vmatprep.subr.mxu0 0.0
    %1166 = vmatpush1.msra.mxu0 0.0
    %1167 = vmatprep.subr.mxu0 0.0
    %1168 = vmatpush1.msra.mxu0 0.0
    %1169 = vmatprep.subr.mxu0 0.0
    %1170 = vmatpush1.msra.mxu0 0.0
    %1171 = vmatprep.mubr.f32.mxu0 0.0
    %1172 = vmatmul.mubr.f32.gmra.mrb[0].mxu0 %v1105
    %v1173 = vpop.f32.mrb[0].mxu0
    %v1174 = vadd.f32 %v1099, %v1173
    %v1175 = vpop.f32.mrb[0].mxu0
    %1176 = vdwg.mxu0
    %v1177 = vadd.f32 %v149, %v1174
    %v1178 = vxor.u32 %v1177, 2147483648
    %v1179 = vmul.f32 %v1178, 1.442695
    %v1180 = vpow.pop %v1179
    %v1181 = vadd.f32 %v1180, 1.0
    %v1182 = vrcp.pop %v1181
    %v1183 = vmul.f32 1.0, %v1182
    %v1184 = vtanh.pop %v1177
    %v1186 = vrot.slane %v981, 6
    %v1188 = vmul.f32 %v1183, %v1186
    %1190 = vrot.lane.b32.xlu0 %v1184, 96
    %v1191 = vpop.permute.xlu0 %1190
    %v1193 = vmul.f32 %v1183, %v1191
    %1195 = vrot.lane.b32.xlu0 %v1193, 16
    %v1196 = vpop.permute.xlu0 %1195
    %v1198 = vadd.f32 %v1188, %v1196
    %v1199 = vtanh.pop %v1198
    %1201 = vrot.lane.b32.xlu0 %v1199, 32
    %v1202 = vpop.permute.xlu0 %1201
    %v1204 = vmul.f32 %v1183, %v1202
    %v1206 = vrot.slane %v1174, 2
    %v1208 = vadd.f32 %v144, %v1206
    %v1209 = vxor.u32 %v1208, 2147483648
    %v1210 = vmul.f32 %v1209, 1.442695
    %v1211 = vpow.pop %v1210
    %v1212 = vadd.f32 %v1211, 1.0
    %v1213 = vrcp.pop %v1212
    %v1214 = vmul.f32 1.0, %v1213
    %v1215 = vtanh.pop %v1208
    %v1217 = vrot.slane %v1009, 2
    %v1219 = vmul.f32 %v1214, %v1217
    %1221 = vrot.lane.b32.xlu0 %v1215, 96
    %v1222 = vpop.permute.xlu0 %1221
    %v1224 = vmul.f32 %v1214, %v1222
    %1226 = vrot.lane.b32.xlu0 %v1224, 16
    %v1227 = vpop.permute.xlu0 %1226
    %v1229 = vadd.f32 %v1219, %v1227
    %v1230 = vtanh.pop %v1229
    %1232 = vrot.lane.b32.xlu0 %v1230, 32
    %v1233 = vpop.permute.xlu0 %1232
    %v1235 = vmul.f32 %v1214, %v1233
    %1237 = vrot.lane.b32.xlu0 %v1204, 80
    %v1238 = vpop.permute.xlu0 %1237
    %1240 = vst.msk [vmem:[#allocation8 + $0x8] sm:$0x3] %vm356, %v1238
    %1242 = vrot.lane.b32.xlu0 %v1235, 32
    %v1243 = vpop.permute.xlu0 %1242
    %1245 = vst.msk [vmem:[#allocation8] sm:$0xc0] %vm362, %v1243
    %v1246 = vrot.slane %v1235, 6
    %1247 = vrot.lane.b32.xlu0 %v1246, 16
    %v1248 = vpop.permute.xlu0 %1247
    %v1249 = vsel %vm70, %v1248, 0
    %1251 = vmatprep.subr.mxu0 0.0
    %1252 = vmatpush1.msra.mxu0 %v154
    %1253 = vmatprep.subr.mxu0 0.0
    %1254 = vmatpush1.msra.mxu0 %v155
    %1255 = vmatprep.subr.mxu0 0.0
    %1256 = vmatpush1.msra.mxu0 0.0
    %1257 = vmatprep.subr.mxu0 0.0
    %1258 = vmatpush1.msra.mxu0 0.0
    %1259 = vmatprep.subr.mxu0 0.0
    %1260 = vmatpush1.msra.mxu0 0.0
    %1261 = vmatprep.subr.mxu0 0.0
    %1262 = vmatpush1.msra.mxu0 0.0
    %1263 = vmatprep.subr.mxu0 0.0
    %1264 = vmatpush1.msra.mxu0 0.0
    %1265 = vmatprep.subr.mxu0 0.0
    %1266 = vmatpush1.msra.mxu0 0.0
    %1267 = vmatprep.subr.mxu0 0.0
    %1268 = vmatpush1.msra.mxu0 0.0
    %1269 = vmatprep.subr.mxu0 0.0
    %1270 = vmatpush1.msra.mxu0 0.0
    %1271 = vmatprep.subr.mxu0 0.0
    %1272 = vmatpush1.msra.mxu0 0.0
    %1273 = vmatprep.subr.mxu0 0.0
    %1274 = vmatpush1.msra.mxu0 0.0
    %1275 = vmatprep.subr.mxu0 0.0
    %1276 = vmatpush1.msra.mxu0 0.0
    %1277 = vmatprep.subr.mxu0 0.0
    %1278 = vmatpush1.msra.mxu0 0.0
    %1279 = vmatprep.subr.mxu0 0.0
    %1280 = vmatpush1.msra.mxu0 0.0
    %1281 = vmatprep.subr.mxu0 0.0
    %1282 = vmatpush1.msra.mxu0 0.0
    %1283 = vmatprep.subr.mxu0 0.0
    %1284 = vmatpush1.msra.mxu0 0.0
    %1285 = vmatprep.subr.mxu0 0.0
    %1286 = vmatpush1.msra.mxu0 0.0
    %1287 = vmatprep.subr.mxu0 0.0
    %1288 = vmatpush1.msra.mxu0 0.0
    %1289 = vmatprep.subr.mxu0 0.0
    %1290 = vmatpush1.msra.mxu0 0.0
    %1291 = vmatprep.subr.mxu0 0.0
    %1292 = vmatpush1.msra.mxu0 0.0
    %1293 = vmatprep.subr.mxu0 0.0
    %1294 = vmatpush1.msra.mxu0 0.0
    %1295 = vmatprep.subr.mxu0 0.0
    %1296 = vmatpush1.msra.mxu0 0.0
    %1297 = vmatprep.subr.mxu0 0.0
    %1298 = vmatpush1.msra.mxu0 0.0
    %1299 = vmatprep.subr.mxu0 0.0
    %1300 = vmatpush1.msra.mxu0 0.0
    %1301 = vmatprep.subr.mxu0 0.0
    %1302 = vmatpush1.msra.mxu0 0.0
    %1303 = vmatprep.subr.mxu0 0.0
    %1304 = vmatpush1.msra.mxu0 0.0
    %1305 = vmatprep.subr.mxu0 0.0
    %1306 = vmatpush1.msra.mxu0 0.0
    %1307 = vmatprep.subr.mxu0 0.0
    %1308 = vmatpush1.msra.mxu0 0.0
    %1309 = vmatprep.subr.mxu0 0.0
    %1310 = vmatpush1.msra.mxu0 0.0
    %1311 = vmatprep.subr.mxu0 0.0
    %1312 = vmatpush1.msra.mxu0 0.0
    %1313 = vmatprep.subr.mxu0 0.0
    %1314 = vmatpush1.msra.mxu0 0.0
    %1315 = vmatprep.mubr.f32.mxu0 0.0
    %1316 = vmatmul.mubr.f32.gmra.mrb[0].mxu0 %v1249
    %v1317 = vpop.f32.mrb[0].mxu0
    %v1318 = vadd.f32 0.0, %v1317
    %v1319 = vpop.f32.mrb[0].mxu0
    %1320 = vdwg.mxu0
    %v1321 = vsel %vm70, %v1238, 0
    %1323 = vmatprep.subr.mxu0 0.0
    %1324 = vmatpush1.msra.mxu0 %v152
    %1325 = vmatprep.subr.mxu0 0.0
    %1326 = vmatpush1.msra.mxu0 %v153
    %1327 = vmatprep.subr.mxu0 0.0
    %1328 = vmatpush1.msra.mxu0 0.0
    %1329 = vmatprep.subr.mxu0 0.0
    %1330 = vmatpush1.msra.mxu0 0.0
    %1331 = vmatprep.subr.mxu0 0.0
    %1332 = vmatpush1.msra.mxu0 0.0
    %1333 = vmatprep.subr.mxu0 0.0
    %1334 = vmatpush1.msra.mxu0 0.0
    %1335 = vmatprep.subr.mxu0 0.0
    %1336 = vmatpush1.msra.mxu0 0.0
    %1337 = vmatprep.subr.mxu0 0.0
    %1338 = vmatpush1.msra.mxu0 0.0
    %1339 = vmatprep.subr.mxu0 0.0
    %1340 = vmatpush1.msra.mxu0 0.0
    %1341 = vmatprep.subr.mxu0 0.0
    %1342 = vmatpush1.msra.mxu0 0.0
    %1343 = vmatprep.subr.mxu0 0.0
    %1344 = vmatpush1.msra.mxu0 0.0
    %1345 = vmatprep.subr.mxu0 0.0
    %1346 = vmatpush1.msra.mxu0 0.0
    %1347 = vmatprep.subr.mxu0 0.0
    %1348 = vmatpush1.msra.mxu0 0.0
    %1349 = vmatprep.subr.mxu0 0.0
    %1350 = vmatpush1.msra.mxu0 0.0
    %1351 = vmatprep.subr.mxu0 0.0
    %1352 = vmatpush1.msra.mxu0 0.0
    %1353 = vmatprep.subr.mxu0 0.0
    %1354 = vmatpush1.msra.mxu0 0.0
    %1355 = vmatprep.subr.mxu0 0.0
    %1356 = vmatpush1.msra.mxu0 0.0
    %1357 = vmatprep.subr.mxu0 0.0
    %1358 = vmatpush1.msra.mxu0 0.0
    %1359 = vmatprep.subr.mxu0 0.0
    %1360 = vmatpush1.msra.mxu0 0.0
    %1361 = vmatprep.subr.mxu0 0.0
    %1362 = vmatpush1.msra.mxu0 0.0
    %1363 = vmatprep.subr.mxu0 0.0
    %1364 = vmatpush1.msra.mxu0 0.0
    %1365 = vmatprep.subr.mxu0 0.0
    %1366 = vmatpush1.msra.mxu0 0.0
    %1367 = vmatprep.subr.mxu0 0.0
    %1368 = vmatpush1.msra.mxu0 0.0
    %1369 = vmatprep.subr.mxu0 0.0
    %1370 = vmatpush1.msra.mxu0 0.0
    %1371 = vmatprep.subr.mxu0 0.0
    %1372 = vmatpush1.msra.mxu0 0.0
    %1373 = vmatprep.subr.mxu0 0.0
    %1374 = vmatpush1.msra.mxu0 0.0
    %1375 = vmatprep.subr.mxu0 0.0
    %1376 = vmatpush1.msra.mxu0 0.0
    %1377 = vmatprep.subr.mxu0 0.0
    %1378 = vmatpush1.msra.mxu0 0.0
    %1379 = vmatprep.subr.mxu0 0.0
    %1380 = vmatpush1.msra.mxu0 0.0
    %1381 = vmatprep.subr.mxu0 0.0
    %1382 = vmatpush1.msra.mxu0 0.0
    %1383 = vmatprep.subr.mxu0 0.0
    %1384 = vmatpush1.msra.mxu0 0.0
    %1385 = vmatprep.subr.mxu0 0.0
    %1386 = vmatpush1.msra.mxu0 0.0
    %1387 = vmatprep.mubr.f32.mxu0 0.0
    %1388 = vmatmul.mubr.f32.gmra.mrb[0].mxu0 %v1321
    %v1389 = vpop.f32.mrb[0].mxu0
    %v1390 = vadd.f32 %v1318, %v1389
    %v1391 = vpop.f32.mrb[0].mxu0
    %1392 = vdwg.mxu0
    %v1394 = vrot.slane %v1390, 6
    %v1396 = vadd.f32 %v149, %v1394
    %v1397 = vxor.u32 %v1396, 2147483648
    %v1398 = vmul.f32 %v1397, 1.442695
    %v1399 = vpow.pop %v1398
    %v1400 = vadd.f32 %v1399, 1.0
    %v1401 = vrcp.pop %v1400
    %v1402 = vmul.f32 1.0, %v1401
    %v1403 = vtanh.pop %v1396
    %v1405 = vrot.slane %v1198, 6
    %v1407 = vmul.f32 %v1402, %v1405
    %1409 = vrot.lane.b32.xlu0 %v1403, 96
    %v1410 = vpop.permute.xlu0 %1409
    %v1412 = vmul.f32 %v1402, %v1410
    %1414 = vrot.lane.b32.xlu0 %v1412, 16
    %v1415 = vpop.permute.xlu0 %1414
    %v1417 = vadd.f32 %v1407, %v1415
    %v1418 = vtanh.pop %v1417
    %1420 = vrot.lane.b32.xlu0 %v1418, 32
    %v1421 = vpop.permute.xlu0 %1420
    %v1423 = vmul.f32 %v1402, %v1421
    %v1424 = vrot.slane %v1390, 4
    %v1426 = vadd.f32 %v144, %v1424
    %v1427 = vxor.u32 %v1426, 2147483648
    %v1428 = vmul.f32 %v1427, 1.442695
    %v1429 = vpow.pop %v1428
    %v1430 = vadd.f32 %v1429, 1.0
    %v1431 = vrcp.pop %v1430
    %v1432 = vmul.f32 1.0, %v1431
    %v1433 = vtanh.pop %v1426
    %v1435 = vrot.slane %v1229, 2
    %v1437 = vmul.f32 %v1432, %v1435
    %1439 = vrot.lane.b32.xlu0 %v1433, 96
    %v1440 = vpop.permute.xlu0 %1439
    %v1442 = vmul.f32 %v1432, %v1440
    %1444 = vrot.lane.b32.xlu0 %v1442, 16
    %v1445 = vpop.permute.xlu0 %1444
    %v1447 = vadd.f32 %v1437, %v1445
    %v1448 = vtanh.pop %v1447
    %1450 = vrot.lane.b32.xlu0 %v1448, 32
    %v1451 = vpop.permute.xlu0 %1450
    %v1453 = vmul.f32 %v1432, %v1451
    %1455 = vrot.lane.b32.xlu0 %v1423, 80
    %v1456 = vpop.permute.xlu0 %1455
    %1458 = vst.msk [vmem:[#allocation8 + $0x8] sm:$0xc] %vm576, %v1456
    %1460 = vrot.lane.b32.xlu0 %v1453, 32
    %v1461 = vpop.permute.xlu0 %1460
    %1463 = vst.msk [vmem:[#allocation8] sm:$0x30] %vm582, %v1461
    %v1464 = vrot.slane %v1453, 4
    %1465 = vrot.lane.b32.xlu0 %v1464, 16
    %v1466 = vpop.permute.xlu0 %1465
    %v1467 = vsel %vm70, %v1466, 0
    %1469 = vmatprep.subr.mxu0 0.0
    %1470 = vmatpush1.msra.mxu0 %v154
    %1471 = vmatprep.subr.mxu0 0.0
    %1472 = vmatpush1.msra.mxu0 %v155
    %1473 = vmatprep.subr.mxu0 0.0
    %1474 = vmatpush1.msra.mxu0 0.0
    %1475 = vmatprep.subr.mxu0 0.0
    %1476 = vmatpush1.msra.mxu0 0.0
    %1477 = vmatprep.subr.mxu0 0.0
    %1478 = vmatpush1.msra.mxu0 0.0
    %1479 = vmatprep.subr.mxu0 0.0
    %1480 = vmatpush1.msra.mxu0 0.0
    %1481 = vmatprep.subr.mxu0 0.0
    %1482 = vmatpush1.msra.mxu0 0.0
    %1483 = vmatprep.subr.mxu0 0.0
    %1484 = vmatpush1.msra.mxu0 0.0
    %1485 = vmatprep.subr.mxu0 0.0
    %1486 = vmatpush1.msra.mxu0 0.0
    %1487 = vmatprep.subr.mxu0 0.0
    %1488 = vmatpush1.msra.mxu0 0.0
    %1489 = vmatprep.subr.mxu0 0.0
    %1490 = vmatpush1.msra.mxu0 0.0
    %1491 = vmatprep.subr.mxu0 0.0
    %1492 = vmatpush1.msra.mxu0 0.0
    %1493 = vmatprep.subr.mxu0 0.0
    %1494 = vmatpush1.msra.mxu0 0.0
    %1495 = vmatprep.subr.mxu0 0.0
    %1496 = vmatpush1.msra.mxu0 0.0
    %1497 = vmatprep.subr.mxu0 0.0
    %1498 = vmatpush1.msra.mxu0 0.0
    %1499 = vmatprep.subr.mxu0 0.0
    %1500 = vmatpush1.msra.mxu0 0.0
    %1501 = vmatprep.subr.mxu0 0.0
    %1502 = vmatpush1.msra.mxu0 0.0
    %1503 = vmatprep.subr.mxu0 0.0
    %1504 = vmatpush1.msra.mxu0 0.0
    %1505 = vmatprep.subr.mxu0 0.0
    %1506 = vmatpush1.msra.mxu0 0.0
    %1507 = vmatprep.subr.mxu0 0.0
    %1508 = vmatpush1.msra.mxu0 0.0
    %1509 = vmatprep.subr.mxu0 0.0
    %1510 = vmatpush1.msra.mxu0 0.0
    %1511 = vmatprep.subr.mxu0 0.0
    %1512 = vmatpush1.msra.mxu0 0.0
    %1513 = vmatprep.subr.mxu0 0.0
    %1514 = vmatpush1.msra.mxu0 0.0
    %1515 = vmatprep.subr.mxu0 0.0
    %1516 = vmatpush1.msra.mxu0 0.0
    %1517 = vmatprep.subr.mxu0 0.0
    %1518 = vmatpush1.msra.mxu0 0.0
    %1519 = vmatprep.subr.mxu0 0.0
    %1520 = vmatpush1.msra.mxu0 0.0
    %1521 = vmatprep.subr.mxu0 0.0
    %1522 = vmatpush1.msra.mxu0 0.0
    %1523 = vmatprep.subr.mxu0 0.0
    %1524 = vmatpush1.msra.mxu0 0.0
    %1525 = vmatprep.subr.mxu0 0.0
    %1526 = vmatpush1.msra.mxu0 0.0
    %1527 = vmatprep.subr.mxu0 0.0
    %1528 = vmatpush1.msra.mxu0 0.0
    %1529 = vmatprep.subr.mxu0 0.0
    %1530 = vmatpush1.msra.mxu0 0.0
    %1531 = vmatprep.subr.mxu0 0.0
    %1532 = vmatpush1.msra.mxu0 0.0
    %1533 = vmatprep.mubr.f32.mxu0 0.0
    %1534 = vmatmul.mubr.f32.gmra.mrb[0].mxu0 %v1467
    %v1535 = vpop.f32.mrb[0].mxu0
    %v1536 = vadd.f32 0.0, %v1535
    %v1537 = vpop.f32.mrb[0].mxu0
    %1538 = vdwg.mxu0
    %v1539 = vrot.slane %v1423, 2
    %1540 = vrot.lane.b32.xlu0 %v1539, 80
    %v1541 = vpop.permute.xlu0 %1540
    %v1542 = vsel %vm70, %v1541, 0
    %1544 = vmatprep.subr.mxu0 0.0
    %1545 = vmatpush1.msra.mxu0 %v152
    %1546 = vmatprep.subr.mxu0 0.0
    %1547 = vmatpush1.msra.mxu0 %v153
    %1548 = vmatprep.subr.mxu0 0.0
    %1549 = vmatpush1.msra.mxu0 0.0
    %1550 = vmatprep.subr.mxu0 0.0
    %1551 = vmatpush1.msra.mxu0 0.0
    %1552 = vmatprep.subr.mxu0 0.0
    %1553 = vmatpush1.msra.mxu0 0.0
    %1554 = vmatprep.subr.mxu0 0.0
    %1555 = vmatpush1.msra.mxu0 0.0
    %1556 = vmatprep.subr.mxu0 0.0
    %1557 = vmatpush1.msra.mxu0 0.0
    %1558 = vmatprep.subr.mxu0 0.0
    %1559 = vmatpush1.msra.mxu0 0.0
    %1560 = vmatprep.subr.mxu0 0.0
    %1561 = vmatpush1.msra.mxu0 0.0
    %1562 = vmatprep.subr.mxu0 0.0
    %1563 = vmatpush1.msra.mxu0 0.0
    %1564 = vmatprep.subr.mxu0 0.0
    %1565 = vmatpush1.msra.mxu0 0.0
    %1566 = vmatprep.subr.mxu0 0.0
    %1567 = vmatpush1.msra.mxu0 0.0
    %1568 = vmatprep.subr.mxu0 0.0
    %1569 = vmatpush1.msra.mxu0 0.0
    %1570 = vmatprep.subr.mxu0 0.0
    %1571 = vmatpush1.msra.mxu0 0.0
    %1572 = vmatprep.subr.mxu0 0.0
    %1573 = vmatpush1.msra.mxu0 0.0
    %1574 = vmatprep.subr.mxu0 0.0
    %1575 = vmatpush1.msra.mxu0 0.0
    %1576 = vmatprep.subr.mxu0 0.0
    %1577 = vmatpush1.msra.mxu0 0.0
    %1578 = vmatprep.subr.mxu0 0.0
    %1579 = vmatpush1.msra.mxu0 0.0
    %1580 = vmatprep.subr.mxu0 0.0
    %1581 = vmatpush1.msra.mxu0 0.0
    %1582 = vmatprep.subr.mxu0 0.0
    %1583 = vmatpush1.msra.mxu0 0.0
    %1584 = vmatprep.subr.mxu0 0.0
    %1585 = vmatpush1.msra.mxu0 0.0
    %1586 = vmatprep.subr.mxu0 0.0
    %1587 = vmatpush1.msra.mxu0 0.0
    %1588 = vmatprep.subr.mxu0 0.0
    %1589 = vmatpush1.msra.mxu0 0.0
    %1590 = vmatprep.subr.mxu0 0.0
    %1591 = vmatpush1.msra.mxu0 0.0
    %1592 = vmatprep.subr.mxu0 0.0
    %1593 = vmatpush1.msra.mxu0 0.0
    %1594 = vmatprep.subr.mxu0 0.0
    %1595 = vmatpush1.msra.mxu0 0.0
    %1596 = vmatprep.subr.mxu0 0.0
    %1597 = vmatpush1.msra.mxu0 0.0
    %1598 = vmatprep.subr.mxu0 0.0
    %1599 = vmatpush1.msra.mxu0 0.0
    %1600 = vmatprep.subr.mxu0 0.0
    %1601 = vmatpush1.msra.mxu0 0.0
    %1602 = vmatprep.subr.mxu0 0.0
    %1603 = vmatpush1.msra.mxu0 0.0
    %1604 = vmatprep.subr.mxu0 0.0
    %1605 = vmatpush1.msra.mxu0 0.0
    %1606 = vmatprep.subr.mxu0 0.0
    %1607 = vmatpush1.msra.mxu0 0.0
    %1608 = vmatprep.mubr.f32.mxu0 0.0
    %1609 = vmatmul.mubr.f32.gmra.mrb[0].mxu0 %v1542
    %v1610 = vpop.f32.mrb[0].mxu0
    %v1611 = vadd.f32 %v1536, %v1610
    %v1612 = vpop.f32.mrb[0].mxu0
    %1613 = vdwg.mxu0
    %v1615 = vrot.slane %v1611, 4
    %v1617 = vadd.f32 %v149, %v1615
    %v1618 = vxor.u32 %v1617, 2147483648
    %v1619 = vmul.f32 %v1618, 1.442695
    %v1620 = vpow.pop %v1619
    %v1621 = vadd.f32 %v1620, 1.0
    %v1622 = vrcp.pop %v1621
    %v1623 = vmul.f32 1.0, %v1622
    %v1624 = vtanh.pop %v1617
    %v1626 = vrot.slane %v1417, 6
    %v1628 = vmul.f32 %v1623, %v1626
    %1630 = vrot.lane.b32.xlu0 %v1624, 96
    %v1631 = vpop.permute.xlu0 %1630
    %v1633 = vmul.f32 %v1623, %v1631
    %1635 = vrot.lane.b32.xlu0 %v1633, 16
    %v1636 = vpop.permute.xlu0 %1635
    %v1638 = vadd.f32 %v1628, %v1636
    %v1639 = vtanh.pop %v1638
    %1641 = vrot.lane.b32.xlu0 %v1639, 32
    %v1642 = vpop.permute.xlu0 %1641
    %v1644 = vmul.f32 %v1623, %v1642
    %v1645 = vrot.slane %v1611, 6
    %v1647 = vadd.f32 %v144, %v1645
    %v1648 = vxor.u32 %v1647, 2147483648
    %v1649 = vmul.f32 %v1648, 1.442695
    %v1650 = vpow.pop %v1649
    %v1651 = vadd.f32 %v1650, 1.0
    %v1652 = vrcp.pop %v1651
    %v1653 = vmul.f32 1.0, %v1652
    %v1654 = vtanh.pop %v1647
    %v1656 = vrot.slane %v1447, 2
    %v1658 = vmul.f32 %v1653, %v1656
    %1660 = vrot.lane.b32.xlu0 %v1654, 96
    %v1661 = vpop.permute.xlu0 %1660
    %v1663 = vmul.f32 %v1653, %v1661
    %1665 = vrot.lane.b32.xlu0 %v1663, 16
    %v1666 = vpop.permute.xlu0 %1665
    %v1668 = vadd.f32 %v1658, %v1666
    %v1669 = vtanh.pop %v1668
    %1671 = vrot.lane.b32.xlu0 %v1669, 32
    %v1672 = vpop.permute.xlu0 %1671
    %v1674 = vmul.f32 %v1653, %v1672
    %1676 = vrot.lane.b32.xlu0 %v1644, 80
    %v1677 = vpop.permute.xlu0 %1676
    %1679 = vst.msk [vmem:[#allocation8 + $0x8] sm:$0x30] %vm799, %v1677
    %1681 = vrot.lane.b32.xlu0 %v1674, 32
    %v1682 = vpop.permute.xlu0 %1681
    %1684 = vst.msk [vmem:[#allocation8] sm:$0xc] %vm805, %v1682
    %v1685 = vrot.slane %v1674, 2
    %1686 = vrot.lane.b32.xlu0 %v1685, 16
    %v1687 = vpop.permute.xlu0 %1686
    %v1688 = vsel %vm70, %v1687, 0
    %1690 = vmatprep.subr.mxu0 0.0
    %1691 = vmatpush1.msra.mxu0 %v154
    %1692 = vmatprep.subr.mxu0 0.0
    %1693 = vmatpush1.msra.mxu0 %v155
    %1694 = vmatprep.subr.mxu0 0.0
    %1695 = vmatpush1.msra.mxu0 0.0
    %1696 = vmatprep.subr.mxu0 0.0
    %1697 = vmatpush1.msra.mxu0 0.0
    %1698 = vmatprep.subr.mxu0 0.0
    %1699 = vmatpush1.msra.mxu0 0.0
    %1700 = vmatprep.subr.mxu0 0.0
    %1701 = vmatpush1.msra.mxu0 0.0
    %1702 = vmatprep.subr.mxu0 0.0
    %1703 = vmatpush1.msra.mxu0 0.0
    %1704 = vmatprep.subr.mxu0 0.0
    %1705 = vmatpush1.msra.mxu0 0.0
    %1706 = vmatprep.subr.mxu0 0.0
    %1707 = vmatpush1.msra.mxu0 0.0
    %1708 = vmatprep.subr.mxu0 0.0
    %1709 = vmatpush1.msra.mxu0 0.0
    %1710 = vmatprep.subr.mxu0 0.0
    %1711 = vmatpush1.msra.mxu0 0.0
    %1712 = vmatprep.subr.mxu0 0.0
    %1713 = vmatpush1.msra.mxu0 0.0
    %1714 = vmatprep.subr.mxu0 0.0
    %1715 = vmatpush1.msra.mxu0 0.0
    %1716 = vmatprep.subr.mxu0 0.0
    %1717 = vmatpush1.msra.mxu0 0.0
    %1718 = vmatprep.subr.mxu0 0.0
    %1719 = vmatpush1.msra.mxu0 0.0
    %1720 = vmatprep.subr.mxu0 0.0
    %1721 = vmatpush1.msra.mxu0 0.0
    %1722 = vmatprep.subr.mxu0 0.0
    %1723 = vmatpush1.msra.mxu0 0.0
    %1724 = vmatprep.subr.mxu0 0.0
    %1725 = vmatpush1.msra.mxu0 0.0
    %1726 = vmatprep.subr.mxu0 0.0
    %1727 = vmatpush1.msra.mxu0 0.0
    %1728 = vmatprep.subr.mxu0 0.0
    %1729 = vmatpush1.msra.mxu0 0.0
    %1730 = vmatprep.subr.mxu0 0.0
    %1731 = vmatpush1.msra.mxu0 0.0
    %1732 = vmatprep.subr.mxu0 0.0
    %1733 = vmatpush1.msra.mxu0 0.0
    %1734 = vmatprep.subr.mxu0 0.0
    %1735 = vmatpush1.msra.mxu0 0.0
    %1736 = vmatprep.subr.mxu0 0.0
    %1737 = vmatpush1.msra.mxu0 0.0
    %1738 = vmatprep.subr.mxu0 0.0
    %1739 = vmatpush1.msra.mxu0 0.0
    %1740 = vmatprep.subr.mxu0 0.0
    %1741 = vmatpush1.msra.mxu0 0.0
    %1742 = vmatprep.subr.mxu0 0.0
    %1743 = vmatpush1.msra.mxu0 0.0
    %1744 = vmatprep.subr.mxu0 0.0
    %1745 = vmatpush1.msra.mxu0 0.0
    %1746 = vmatprep.subr.mxu0 0.0
    %1747 = vmatpush1.msra.mxu0 0.0
    %1748 = vmatprep.subr.mxu0 0.0
    %1749 = vmatpush1.msra.mxu0 0.0
    %1750 = vmatprep.subr.mxu0 0.0
    %1751 = vmatpush1.msra.mxu0 0.0
    %1752 = vmatprep.subr.mxu0 0.0
    %1753 = vmatpush1.msra.mxu0 0.0
    %1754 = vmatprep.mubr.f32.mxu0 0.0
    %1755 = vmatmul.mubr.f32.gmra.mrb[0].mxu0 %v1688
    %v1756 = vpop.f32.mrb[0].mxu0
    %v1757 = vadd.f32 0.0, %v1756
    %v1758 = vpop.f32.mrb[0].mxu0
    %1759 = vdwg.mxu0
    %v1760 = vrot.slane %v1644, 4
    %1761 = vrot.lane.b32.xlu0 %v1760, 80
    %v1762 = vpop.permute.xlu0 %1761
    %v1763 = vsel %vm70, %v1762, 0
    %1765 = vmatprep.subr.mxu0 0.0
    %1766 = vmatpush1.msra.mxu0 %v152
    %1767 = vmatprep.subr.mxu0 0.0
    %1768 = vmatpush1.msra.mxu0 %v153
    %1769 = vmatprep.subr.mxu0 0.0
    %1770 = vmatpush1.msra.mxu0 0.0
    %1771 = vmatprep.subr.mxu0 0.0
    %1772 = vmatpush1.msra.mxu0 0.0
    %1773 = vmatprep.subr.mxu0 0.0
    %1774 = vmatpush1.msra.mxu0 0.0
    %1775 = vmatprep.subr.mxu0 0.0
    %1776 = vmatpush1.msra.mxu0 0.0
    %1777 = vmatprep.subr.mxu0 0.0
    %1778 = vmatpush1.msra.mxu0 0.0
    %1779 = vmatprep.subr.mxu0 0.0
    %1780 = vmatpush1.msra.mxu0 0.0
    %1781 = vmatprep.subr.mxu0 0.0
    %1782 = vmatpush1.msra.mxu0 0.0
    %1783 = vmatprep.subr.mxu0 0.0
    %1784 = vmatpush1.msra.mxu0 0.0
    %1785 = vmatprep.subr.mxu0 0.0
    %1786 = vmatpush1.msra.mxu0 0.0
    %1787 = vmatprep.subr.mxu0 0.0
    %1788 = vmatpush1.msra.mxu0 0.0
    %1789 = vmatprep.subr.mxu0 0.0
    %1790 = vmatpush1.msra.mxu0 0.0
    %1791 = vmatprep.subr.mxu0 0.0
    %1792 = vmatpush1.msra.mxu0 0.0
    %1793 = vmatprep.subr.mxu0 0.0
    %1794 = vmatpush1.msra.mxu0 0.0
    %1795 = vmatprep.subr.mxu0 0.0
    %1796 = vmatpush1.msra.mxu0 0.0
    %1797 = vmatprep.subr.mxu0 0.0
    %1798 = vmatpush1.msra.mxu0 0.0
    %1799 = vmatprep.subr.mxu0 0.0
    %1800 = vmatpush1.msra.mxu0 0.0
    %1801 = vmatprep.subr.mxu0 0.0
    %1802 = vmatpush1.msra.mxu0 0.0
    %1803 = vmatprep.subr.mxu0 0.0
    %1804 = vmatpush1.msra.mxu0 0.0
    %1805 = vmatprep.subr.mxu0 0.0
    %1806 = vmatpush1.msra.mxu0 0.0
    %1807 = vmatprep.subr.mxu0 0.0
    %1808 = vmatpush1.msra.mxu0 0.0
    %1809 = vmatprep.subr.mxu0 0.0
    %1810 = vmatpush1.msra.mxu0 0.0
    %1811 = vmatprep.subr.mxu0 0.0
    %1812 = vmatpush1.msra.mxu0 0.0
    %1813 = vmatprep.subr.mxu0 0.0
    %1814 = vmatpush1.msra.mxu0 0.0
    %1815 = vmatprep.subr.mxu0 0.0
    %1816 = vmatpush1.msra.mxu0 0.0
    %1817 = vmatprep.subr.mxu0 0.0
    %1818 = vmatpush1.msra.mxu0 0.0
    %1819 = vmatprep.subr.mxu0 0.0
    %1820 = vmatpush1.msra.mxu0 0.0
    %1821 = vmatprep.subr.mxu0 0.0
    %1822 = vmatpush1.msra.mxu0 0.0
    %1823 = vmatprep.subr.mxu0 0.0
    %1824 = vmatpush1.msra.mxu0 0.0
    %1825 = vmatprep.subr.mxu0 0.0
    %1826 = vmatpush1.msra.mxu0 0.0
    %1827 = vmatprep.subr.mxu0 0.0
    %1828 = vmatpush1.msra.mxu0 0.0
    %1829 = vmatprep.mubr.f32.mxu0 0.0
    %1830 = vmatmul.mubr.f32.gmra.mrb[0].mxu0 %v1763
    %v1831 = vpop.f32.mrb[0].mxu0
    %v1832 = vadd.f32 %v1757, %v1831
    %v1833 = vpop.f32.mrb[0].mxu0
    %1834 = vdwg.mxu0
    %v1836 = vrot.slane %v1832, 2
    %v1838 = vadd.f32 %v149, %v1836
    %v1839 = vxor.u32 %v1838, 2147483648
    %v1840 = vmul.f32 %v1839, 1.442695
    %v1841 = vpow.pop %v1840
    %v1842 = vadd.f32 %v1841, 1.0
    %v1843 = vrcp.pop %v1842
    %v1844 = vmul.f32 1.0, %v1843
    %v1845 = vtanh.pop %v1838
    %v1847 = vrot.slane %v1638, 6
    %v1849 = vmul.f32 %v1844, %v1847
    %1851 = vrot.lane.b32.xlu0 %v1845, 96
    %v1852 = vpop.permute.xlu0 %1851
    %v1854 = vmul.f32 %v1844, %v1852
    %1856 = vrot.lane.b32.xlu0 %v1854, 16
    %v1857 = vpop.permute.xlu0 %1856
    %v1859 = vadd.f32 %v1849, %v1857
    %v1860 = vtanh.pop %v1859
    %1862 = vrot.lane.b32.xlu0 %v1860, 32
    %v1863 = vpop.permute.xlu0 %1862
    %v1865 = vmul.f32 %v1844, %v1863
    %v1866 = vadd.f32 %v144, %v1832
    %v1867 = vxor.u32 %v1866, 2147483648
    %v1868 = vmul.f32 %v1867, 1.442695
    %v1869 = vpow.pop %v1868
    %v1870 = vadd.f32 %v1869, 1.0
    %v1871 = vrcp.pop %v1870
    %v1872 = vmul.f32 1.0, %v1871
    %v1873 = vtanh.pop %v1866
    %v1875 = vrot.slane %v1668, 2
    %v1877 = vmul.f32 %v1872, %v1875
    %1879 = vrot.lane.b32.xlu0 %v1873, 96
    %v1880 = vpop.permute.xlu0 %1879
    %v1882 = vmul.f32 %v1872, %v1880
    %1884 = vrot.lane.b32.xlu0 %v1882, 16
    %v1885 = vpop.permute.xlu0 %1884
    %v1887 = vadd.f32 %v1877, %v1885
    %v1888 = vtanh.pop %v1887
    %1890 = vrot.lane.b32.xlu0 %v1888, 32
    %v1891 = vpop.permute.xlu0 %1890
    %v1893 = vmul.f32 %v1872, %v1891
    %1895 = vrot.lane.b32.xlu0 %v1865, 80
    %v1896 = vpop.permute.xlu0 %1895
    %1898 = vst.msk [vmem:[#allocation8 + $0x8] sm:$0xc0] %vm1020, %v1896
    %1900 = vrot.lane.b32.xlu0 %v1893, 32
    %v1901 = vpop.permute.xlu0 %1900
    %1903 = vst.msk [vmem:[#allocation8] sm:$0x3] %vm1026, %v1901
    // Predicated region
    $region30: #{tpu_custom_call.1} parent=1 // pred_check
      _
    $region31: #{tpu_custom_call.1} parent=1 // pred_check_branch
      %1905 = sbr.rel (0) target = $region33
    $region32: #{tpu_custom_call.1} parent=1 // pred_region
      %s1907 = ssub.s32 256, 256
      %1908 = vsyncadd [#allocation4], %s1907
      %s1909 = sshll.u32 [#allocation8], 4
      %s1910 = int_to_ptr.vmem [resolvable:$true] %s1909
      %1915 = dma.vmem_to_hbm [thread:$0]  %s1910, 256, %s4, [#allocation4], 128, 128, 8
    $region33: #{tpu_custom_call.1} parent=1 // pred_fallthru
      _
    // Predicated region
    $region34: #{tpu_custom_call.1} parent=1 // pred_check
      _
    $region35: #{tpu_custom_call.1} parent=1 // pred_check_branch
      %1917 = sbr.rel (0) target = $region37
    $region36: #{tpu_custom_call.1} parent=1 // pred_region
      %1918 = dma.done [#allocation4], 256
    $region37: #{tpu_custom_call.1} parent=1 // pred_fallthru
      _
    %1919 = vsyncpa [#allocation3], 1
    %1920 = vsyncpa [#allocation6], 1
    %1921 = vsyncpa [#allocation4], 1

</llo_original>
